<compile_context>
chip_gen: v6e
topology: v6e:2x2x1
jax: 0.10.0
libtpu: 0.0.40
codegen_flags: <defaults>
</compile_context>

<pallas_src>
import math
import functools

import jax
import jax.numpy as jnp
from jax.experimental import pallas as pl
from jax.experimental.pallas import tpu as pltpu


def _swiftkv_flash_kernel(lens_ref, q_ref, k_ref, v_ref, o_ref,
                          m_sc, l_sc, acc_sc,
                          *, kv_seq_len, num_heads, num_kv_heads, head_dim,
                          mask_tail):
    H, KVH, D = num_heads, num_kv_heads, head_dim
    G = H // KVH
    Bt = q_ref.shape[0]
    Z = Bt * KVH
    St = k_ref.shape[2]
    bi = pl.program_id(0)
    si = pl.program_id(1)

    @pl.when(si == 0)
    def _init():
        m_sc[...] = jnp.full(m_sc.shape, -jnp.inf, m_sc.dtype)
        l_sc[...] = jnp.zeros(l_sc.shape, l_sc.dtype)
        acc_sc[...] = jnp.zeros(acc_sc.shape, acc_sc.dtype)

    # q is already RoPE-rotated and pre-scaled by 1/sqrt(D) (done in XLA).
    # All reshapes below merge/split leading dims only (no lane/sublane relayout).
    qz = q_ref[...].reshape(Z, G, D)
    kz = k_ref[...].reshape(Z, St, D)
    vz = v_ref[...].reshape(Z, St, D)

    if mask_tail:
        # Last S tile overhangs the cache; zero garbage V so p*garbage can't NaN.
        tail_ok = (si * St + jax.lax.broadcasted_iota(jnp.int32, (1, St, 1), 1)) < kv_seq_len
        vz = jnp.where(tail_ok, vz, jnp.zeros_like(vz))

    # --- scores (MXU) ---
    s = jnp.einsum('zgd,zsd->zgs', qz, kz,
                   preferred_element_type=jnp.float32).reshape(Bt, KVH, G, St)

    # --- attention mask rebuilt from per-row valid lengths (SMEM scalars) ---
    # Matches the module: torch.where(attention_mask, -10000.0, attn_weights).
    pos = si * St + jax.lax.broadcasted_iota(jnp.int32, (1, 1, 1, St), 3)
    neg = jnp.float32(-10000.0)
    rows = []
    for b in range(Bt):
        valid_b = pos < lens_ref[bi * Bt + b]                 # (1,1,1,St) bool
        rows.append(jnp.where(valid_b, s[b:b + 1], neg))
    s = jnp.concatenate(rows, axis=0) if Bt > 1 else rows[0]  # (Bt,KVH,G,St)

    # --- online softmax update ---
    m_prev = m_sc[...]                                        # (Bt,KVH,G,1)
    m_new = jnp.maximum(m_prev, jnp.max(s, axis=-1, keepdims=True))
    alpha = jnp.exp(m_prev - m_new)
    p = jnp.exp(s - m_new)                                    # f32
    l_sc[...] = alpha * l_sc[...] + jnp.sum(p, axis=-1, keepdims=True)
    pv = jnp.einsum('zgs,zsd->zgd', p.reshape(Z, G, St).astype(vz.dtype), vz,
                    preferred_element_type=jnp.float32).reshape(Bt, KVH, G, D)
    acc_sc[...] = alpha * acc_sc[...] + pv
    m_sc[...] = m_new

    @pl.when(si == pl.num_programs(1) - 1)
    def _finalize():
        inv_l = pl.reciprocal(l_sc[...], approx=True)
        o_ref[...] = (acc_sc[...] * inv_l).astype(o_ref.dtype)


def _pick_batch_tile(B, max_bt=8):
    divs = [d for d in range(1, min(B, max_bt) + 1) if B % d == 0]
    best = max(divs)
    # Prefer an even number of batch-grid steps so the "parallel" axis can split
    # across the two TensorCores on v7x.
    even_steps = [d for d in divs if (B // d) % 2 == 0]
    if even_steps:
        best = max(even_steps)
    return best


def swiftkv_attention(hidden_states, k_cache, v_cache, position_ids,
                      attention_mask, wq, wo, *, num_heads, head_dim,
                      rope_theta=10000.0, s_tile=512,
                      compute_dtype=jnp.bfloat16):
    B, q_len, hidden = hidden_states.shape
    assert q_len == 1
    KVH, S, D = k_cache.shape[1], k_cache.shape[2], k_cache.shape[3]
    H = num_heads
    G = H // KVH
    assert D == head_dim and H % KVH == 0
    assert wq.shape == (H * D, hidden) and wo.shape == (hidden, H * D)
    assert s_tile % 128 == 0

    cdt = compute_dtype

    # ---- q projection + RoPE + scale in plain XLA (q is only (B,H,D)) ------
    x2d = hidden_states.reshape(B, hidden).astype(cdt)
    q = jax.lax.dot_general(x2d, wq.astype(cdt), (((1,), (1,)), ((), ())),
                            preferred_element_type=jnp.float32)
    q = q.reshape(B, H, D)

    pos_sel = position_ids[jnp.arange(B),
                           jnp.argmax(position_ids.astype(jnp.int32), axis=1)]
    inv_freq = 1.0 / (rope_theta ** (jnp.arange(0, D, 2, dtype=jnp.float32) / D))
    freqs = pos_sel[:, None].astype(jnp.float32) * inv_freq[None, :]      # (B,D/2)
    emb = jnp.concatenate([freqs, freqs], axis=-1)                        # (B,D)
    cos = jnp.cos(emb)[:, None, :]
    sin = jnp.sin(emb)[:, None, :]
    rot = jnp.concatenate([-q[..., D // 2:], q[..., :D // 2]], axis=-1)
    q = (q * cos + rot * sin) * (1.0 / math.sqrt(D))
    q_in = q.reshape(B, KVH, G, D).astype(cdt)            # grouped (leading-dim) layout

    # ---- per-row valid lengths (SMEM scalar prefetch) -----------------------
    # TODO(synk): a general non-prefix attention_mask would need a per-position bias
    # stream; decode masks here are prefix-valid so a per-row length suffices.
    if attention_mask is not None:
        mask2d = attention_mask.reshape(B, S)
        lens = (S - jnp.sum(mask2d.astype(jnp.int32), axis=-1)).astype(jnp.int32)
    else:
        lens = jnp.full((B,), S, dtype=jnp.int32)

    # ---- tiling (generation-aware VMEM budget) ------------------------------
    Bt = _pick_batch_tile(B)

    try:
        vmem_cap = int(pltpu.get_tpu_info().vmem_capacity_bytes)
    except Exception:
        vmem_cap = 64 * 1024 * 1024        # conservative (v7x per-TC) fallback
    budget = int(0.75 * vmem_cap)

    kv_itemsize = jnp.dtype(k_cache.dtype).itemsize
    if S <= s_tile:
        s_tile_eff = S                     # single tile covering the full length
    else:
        s_tile_eff = s_tile
        # keep double-buffered K+V tiles within ~60% of the VMEM budget
        while s_tile_eff > 128 and \
                4 * Bt * KVH * s_tile_eff * D * kv_itemsize > 0.6 * budget:
            s_tile_eff //= 2
    num_s = pl.cdiv(S, s_tile_eff)
    mask_tail = (S % s_tile_eff) != 0

    def _rnd(x, m):
        return ((x + m - 1) // m) * m

    kv_tile_b = Bt * KVH * s_tile_eff * _rnd(D, 128) * kv_itemsize
    head_rows = Bt * KVH * _rnd(G, 8)
    q_b = head_rows * _rnd(D, 128) * 4
    out_b = head_rows * _rnd(D, 128) * 4
    scr_b = head_rows * (2 * 128 + _rnd(D, 128)) * 4
    est = 2 * (2 * kv_tile_b + q_b + out_b) + scr_b          # inputs/outputs double-buffered
    vmem_limit = int(min(budget, max(32 * 1024 * 1024, est + 16 * 1024 * 1024)))

    kernel = functools.partial(
        _swiftkv_flash_kernel, kv_seq_len=S, num_heads=H,
        num_kv_heads=KVH, head_dim=D, mask_tail=mask_tail)

    attn = pl.pallas_call(
        kernel,
        out_shape=jax.ShapeDtypeStruct((B, KVH, G, D), hidden_states.dtype),
        grid_spec=pltpu.PrefetchScalarGridSpec(
            num_scalar_prefetch=1,
            grid=(B // Bt, num_s),
            in_specs=[
                pl.BlockSpec((Bt, KVH, G, D),
                             lambda bi, si, lens_s: (bi, 0, 0, 0)),            # q
                pl.BlockSpec((Bt, KVH, s_tile_eff, D),
                             lambda bi, si, lens_s: (bi, 0, si, 0)),           # k tile
                pl.BlockSpec((Bt, KVH, s_tile_eff, D),
                             lambda bi, si, lens_s: (bi, 0, si, 0)),           # v tile
            ],
            out_specs=pl.BlockSpec((Bt, KVH, G, D),
                                   lambda bi, si, lens_s: (bi, 0, 0, 0)),
            scratch_shapes=[
                pltpu.VMEM((Bt, KVH, G, 1), jnp.float32),   # running max
                pltpu.VMEM((Bt, KVH, G, 1), jnp.float32),   # running sum
                pltpu.VMEM((Bt, KVH, G, D), jnp.float32),   # accumulator
            ],
        ),
        compiler_params=pltpu.CompilerParams(
            dimension_semantics=("parallel", "arbitrary"),
            vmem_limit_bytes=vmem_limit,
        ),
    )(lens, q_in, k_cache, v_cache)

    # o_proj (bf16 GEMM over the whole batch); reshape is pure metadata.
    out = jax.lax.dot_general(attn.reshape(B, H * D).astype(cdt),
                              wo.astype(cdt), (((1,), (1,)), ((), ())),
                              preferred_element_type=jnp.float32)
    return out.reshape(B, 1, hidden).astype(hidden_states.dtype)


def swiftkv_attention_ref(hidden_states, k_cache, v_cache, position_ids,
                          attention_mask, wq, wo, *, num_heads, head_dim,
                          rope_theta=10000.0):
    """Pure-JAX replica of the PyTorch forward (f32), for correctness checking."""
    B = hidden_states.shape[0]
    KVH, S, D = k_cache.shape[1], k_cache.shape[2], k_cache.shape[3]
    H, G = num_heads, num_heads // KVH

    q = hidden_states @ wq.T                                    # (B,1,H*D)
    q = q.reshape(B, 1, H, D).transpose(0, 2, 1, 3)             # (B,H,1,D)

    pos_sel = position_ids[jnp.arange(B),
                           jnp.argmax(position_ids.astype(jnp.int32), axis=1)]
    inv_freq = 1.0 / (rope_theta ** (jnp.arange(0, D, 2, dtype=jnp.float32) / D))
    freqs = pos_sel[:, None].astype(jnp.float32) * inv_freq[None, :]
    emb = jnp.concatenate([freqs, freqs], -1)
    cos = jnp.cos(emb)[:, None, None, :]
    sin = jnp.sin(emb)[:, None, None, :]
    rot = jnp.concatenate([-q[..., D // 2:], q[..., :D // 2]], -1)
    q = q * cos + rot * sin

    k = jnp.repeat(k_cache, G, axis=1)
    v = jnp.repeat(v_cache, G, axis=1)
    w = (q @ jnp.swapaxes(k, 2, 3)) / math.sqrt(D)              # (B,H,1,S)
    if attention_mask is not None:
        w = jnp.where(attention_mask, jnp.float32(-10000.0), w)
    w = jax.nn.softmax(w.astype(jnp.float32), axis=-1)
    o = w @ v                                                   # (B,H,1,D)
    o = o.transpose(0, 2, 1, 3).reshape(B, 1, H * D)
    return o @ wo.T


if __name__ == "__main__":
    # small config consistent with the module (head_dim=128 like real Llama)
    B = 2
    num_heads = 4
    head_dim = 128
    hidden = num_heads * head_dim           # 512
    num_kv_heads = 2
    S = 160                                 # not a tile multiple -> exercises ragged tail
    rope_theta = 10000.0

    key = jax.random.PRNGKey(0)
    ks = jax.random.split(key, 8)

    wq = jax.random.normal(ks[0], (num_heads * head_dim, hidden), jnp.float32) * 0.02
    wo = jax.random.normal(ks[1], (hidden, num_heads * head_dim), jnp.float32) * 0.02

    hidden_states = jax.random.normal(ks[2], (B, 1, hidden), jnp.float32)
    k_cache = jax.random.normal(ks[3], (B, num_kv_heads, S, head_dim), jnp.float32)
    v_cache = jax.random.normal(ks[4], (B, num_kv_heads, S, head_dim), jnp.float32)

    # position_ids: batch 0 has 160 valid positions, batch 1 has 100 (padded with 0)
    valid_len = jnp.array([160, 100], dtype=jnp.int32)
    ar = jnp.arange(S, dtype=jnp.int32)
    position_ids = jnp.where(ar[None, :] < valid_len[:, None], ar[None, :], 0)

    # attention_mask: True == masked out (positions past the current one)
    attention_mask = (ar[None, :] > (valid_len - 1)[:, None]).reshape(B, 1, 1, S)

    ref = swiftkv_attention_ref(hidden_states, k_cache, v_cache, position_ids,
                                attention_mask, wq, wo,
                                num_heads=num_heads, head_dim=head_dim,
                                rope_theta=rope_theta)

    # --- production path: KV cache persisted in bf16 upstream (no per-call cast),
    #     bf16 projections, S tiled so the flash loop + tail mask are exercised ---
    k_bf16 = k_cache.astype(jnp.bfloat16)
    v_bf16 = v_cache.astype(jnp.bfloat16)
    fn_bf16 = jax.jit(functools.partial(
        swiftkv_attention, num_heads=num_heads, head_dim=head_dim,
        rope_theta=rope_theta, s_tile=128, compute_dtype=jnp.bfloat16))
    out = jax.block_until_ready(
        fn_bf16(hidden_states, k_bf16, v_bf16, position_ids, attention_mask, wq, wo))
    assert out.shape == (B, 1, hidden)
    assert jnp.allclose(out, ref, rtol=5e-2, atol=3e-2), "bf16 kernel mismatch vs reference"

    # --- tight numerical check with f32 everywhere (same kernel path) ---
    fn_f32 = jax.jit(functools.partial(
        swiftkv_attention, num_heads=num_heads, head_dim=head_dim,
        rope_theta=rope_theta, s_tile=128, compute_dtype=jnp.float32))
    out_f32 = jax.block_until_ready(
        fn_f32(hidden_states, k_cache, v_cache, position_ids, attention_mask, wq, wo))
    assert jnp.allclose(out_f32, ref, rtol=1e-2, atol=1e-3), "f32 kernel mismatch vs reference"

    print("KERNEL_OK")
</pallas_src>

<mosaic_0001>
module attributes {stable_mosaic.version = 11 : i64} {
  func.func @_swiftkv_flash_kernel(%arg0: i32, %arg1: i32, %arg2: memref<2xi32, #tpu.memory_space<smem>>, %arg3: memref<1x2x2x128xbf16, #tpu.memory_space<vmem>>, %arg4: memref<1x2x128x128xbf16, #tpu.memory_space<vmem>>, %arg5: memref<1x2x128x128xbf16, #tpu.memory_space<vmem>>, %arg6: memref<1x2x2x128xf32, #tpu.memory_space<vmem>>, %arg7: memref<1x2x2x1xf32, #tpu.memory_space<vmem>>, %arg8: memref<1x2x2x1xf32, #tpu.memory_space<vmem>>, %arg9: memref<1x2x2x128xf32, #tpu.memory_space<vmem>>) attributes {dimension_semantics = [#tpu.dimension_semantics<parallel>, #tpu.dimension_semantics<arbitrary>], iteration_bounds = array<i64: 2, 2>, scalar_prefetch = 1 : i64, scratch_operands = 3 : i64, tpu.core_type = #tpu.core_type<tc>, window_params = [{transform_indices = @transform_0, window_bounds = array<i64: 1, 2, 2, 128>}, {transform_indices = @transform_1, window_bounds = array<i64: 1, 2, 128, 128>}, {transform_indices = @transform_2, window_bounds = array<i64: 1, 2, 128, 128>}, {transform_indices = @transform_3, window_bounds = array<i64: 1, 2, 2, 128>}]} {
    %c0_i32 = arith.constant 0 : i32
    %0 = arith.cmpi eq, %arg1, %c0_i32 : i32
    %1 = arith.extui %0 : i1 to i32
    %c0_i32_0 = arith.constant 0 : i32
    %2 = arith.cmpi ne, %1, %c0_i32_0 : i32
    scf.if %2 {
      %cst_45 = arith.constant 0xFF800000 : f32
      %63 = vector.broadcast %cst_45 : f32 to vector<1x2x2x1xf32>
      %c0_46 = arith.constant 0 : index
      %c0_47 = arith.constant 0 : index
      %c0_48 = arith.constant 0 : index
      %c0_49 = arith.constant 0 : index
      %64 = vector.load %arg7[%c0_46, %c0_47, %c0_48, %c0_49] : memref<1x2x2x1xf32, #tpu.memory_space<vmem>>, vector<1x2x2x1xf32>
      tpu.vector_store %arg7[%c0_46, %c0_47, %c0_48, %c0_49], %63 {strides = array<i32>} : memref<1x2x2x1xf32, #tpu.memory_space<vmem>>, vector<1x2x2x1xf32>,
      %cst_50 = arith.constant 0.000000e+00 : f32
      %65 = vector.broadcast %cst_50 : f32 to vector<1x2x2x1xf32>
      %c0_51 = arith.constant 0 : index
      %c0_52 = arith.constant 0 : index
      %c0_53 = arith.constant 0 : index
      %c0_54 = arith.constant 0 : index
      %66 = vector.load %arg8[%c0_51, %c0_52, %c0_53, %c0_54] : memref<1x2x2x1xf32, #tpu.memory_space<vmem>>, vector<1x2x2x1xf32>
      tpu.vector_store %arg8[%c0_51, %c0_52, %c0_53, %c0_54], %65 {strides = array<i32>} : memref<1x2x2x1xf32, #tpu.memory_space<vmem>>, vector<1x2x2x1xf32>,
      %cst_55 = arith.constant 0.000000e+00 : f32
      %67 = vector.broadcast %cst_55 : f32 to vector<1x2x2x128xf32>
      %c0_56 = arith.constant 0 : index
      %c0_57 = arith.constant 0 : index
      %c0_58 = arith.constant 0 : index
      %c0_59 = arith.constant 0 : index
      %68 = vector.load %arg9[%c0_56, %c0_57, %c0_58, %c0_59] : memref<1x2x2x128xf32, #tpu.memory_space<vmem>>, vector<1x2x2x128xf32>
      tpu.vector_store %arg9[%c0_56, %c0_57, %c0_58, %c0_59], %67 {strides = array<i32>} : memref<1x2x2x128xf32, #tpu.memory_space<vmem>>, vector<1x2x2x128xf32>,
    } else {
    }
    %c0 = arith.constant 0 : index
    %c0_1 = arith.constant 0 : index
    %c0_2 = arith.constant 0 : index
    %c0_3 = arith.constant 0 : index
    %3 = vector.load %arg3[%c0, %c0_1, %c0_2, %c0_3] : memref<1x2x2x128xbf16, #tpu.memory_space<vmem>>, vector<1x2x2x128xbf16>
    %4 = vector.shape_cast %3 : vector<1x2x2x128xbf16> to vector<2x2x128xbf16>
    %c0_4 = arith.constant 0 : index
    %c0_5 = arith.constant 0 : index
    %c0_6 = arith.constant 0 : index
    %c0_7 = arith.constant 0 : index
    %5 = vector.load %arg4[%c0_4, %c0_5, %c0_6, %c0_7] : memref<1x2x128x128xbf16, #tpu.memory_space<vmem>>, vector<1x2x128x128xbf16>
    %6 = vector.shape_cast %5 : vector<1x2x128x128xbf16> to vector<2x128x128xbf16>
    %c0_8 = arith.constant 0 : index
    %c0_9 = arith.constant 0 : index
    %c0_10 = arith.constant 0 : index
    %c0_11 = arith.constant 0 : index
    %7 = vector.load %arg5[%c0_8, %c0_9, %c0_10, %c0_11] : memref<1x2x128x128xbf16, #tpu.memory_space<vmem>>, vector<1x2x128x128xbf16>
    %8 = vector.shape_cast %7 : vector<1x2x128x128xbf16> to vector<2x128x128xbf16>
    %c128_i32 = arith.constant 128 : i32
    %9 = arith.muli %arg1, %c128_i32 : i32
    %10 = tpu.iota {dimensions = array<i32: 1>} : vector<1x128x1xi32>
    %11 = vector.broadcast %9 : i32 to vector<1x128x1xi32>
    %12 = arith.addi %11, %10 : vector<1x128x1xi32>
    %c160_i32 = arith.constant 160 : i32
    %13 = vector.broadcast %c160_i32 : i32 to vector<1x128x1xi32>
    %14 = arith.cmpi slt, %12, %13 : vector<1x128x1xi32>
    %cst = arith.constant 0.000000e+00 : bf16
    %15 = vector.broadcast %cst : bf16 to vector<2x128x128xbf16>
    %16 = vector.shape_cast %14 : vector<1x128x1xi1> to vector<1x128x1xi1>
    %17 = vector.broadcast %16 : vector<1x128x1xi1> to vector<2x128x128xi1>
    %18 = arith.select %17, %8, %15 : vector<2x128x128xi1>, vector<2x128x128xbf16>
    "tpu.trace_start"() <{level = 10 : i32, message = "zgd,zsd->zgs"}> : () -> ()
    %cst_12 = arith.constant dense<0.000000e+00> : vector<2x2x128xf32>
    %19 = tpu.matmul %4, %6, %cst_12 {dimension_numbers = #tpu.dot_dimension_numbers<[2], [2], [1], [1], [0, 0, 0, 1, 1, 1], [0], [0]>} : vector<2x2x128xbf16>, vector<2x128x128xbf16>, vector<2x2x128xf32> -> vector<2x2x128xf32>
    "tpu.trace_stop"() : () -> ()
    %20 = vector.shape_cast %19 : vector<2x2x128xf32> to vector<1x2x2x128xf32>
    %c128_i32_13 = arith.constant 128 : i32
    %21 = arith.muli %arg1, %c128_i32_13 : i32
    %22 = tpu.iota {dimensions = array<i32: 3>} : vector<1x1x1x128xi32>
    %23 = vector.broadcast %21 : i32 to vector<1x1x1x128xi32>
    %24 = arith.addi %23, %22 : vector<1x1x1x128xi32>
    %c1_i32 = arith.constant 1 : i32
    %25 = arith.muli %arg0, %c1_i32 : i32
    %c0_i32_14 = arith.constant 0 : i32
    %26 = arith.addi %25, %c0_i32_14 : i32
    %27 = arith.index_cast %26 : i32 to index
    %28 = memref.load %arg2[%27] : memref<2xi32, #tpu.memory_space<smem>>
    %29 = vector.broadcast %28 : i32 to vector<1x1x1x128xi32>
    %30 = arith.cmpi slt, %24, %29 : vector<1x1x1x128xi32>
    %cst_15 = arith.constant -1.000000e+04 : f32
    %31 = vector.shape_cast %30 : vector<1x1x1x128xi1> to vector<1x1x1x128xi1>
    %32 = vector.broadcast %31 : vector<1x1x1x128xi1> to vector<1x2x2x128xi1>
    %33 = vector.broadcast %cst_15 : f32 to vector<1x2x2x128xf32>
    %34 = arith.select %32, %20, %33 : vector<1x2x2x128xi1>, vector<1x2x2x128xf32>
    %c0_16 = arith.constant 0 : index
    %c0_17 = arith.constant 0 : index
    %c0_18 = arith.constant 0 : index
    %c0_19 = arith.constant 0 : index
    %35 = vector.load %arg7[%c0_16, %c0_17, %c0_18, %c0_19] : memref<1x2x2x1xf32, #tpu.memory_space<vmem>>, vector<1x2x2x1xf32>
    %cst_20 = arith.constant dense<0xFF800000> : vector<1x2x2xf32>
    %36 = vector.multi_reduction <maximumf>, %34, %cst_20 [3] : vector<1x2x2x128xf32> to vector<1x2x2xf32>
    %37 = vector.shape_cast %36 : vector<1x2x2xf32> to vector<1x2x2x1xf32>
    %38 = arith.maximumf %35, %37 : vector<1x2x2x1xf32>
    %39 = arith.subf %35, %38 : vector<1x2x2x1xf32>
    %40 = math.exp %39 : vector<1x2x2x1xf32>
    %41 = vector.broadcast %38 : vector<1x2x2x1xf32> to vector<1x2x2x128xf32>
    %42 = arith.subf %34, %41 : vector<1x2x2x128xf32>
    %43 = math.exp %42 : vector<1x2x2x128xf32>
    %c0_21 = arith.constant 0 : index
    %c0_22 = arith.constant 0 : index
    %c0_23 = arith.constant 0 : index
    %c0_24 = arith.constant 0 : index
    %44 = vector.load %arg8[%c0_21, %c0_22, %c0_23, %c0_24] : memref<1x2x2x1xf32, #tpu.memory_space<vmem>>, vector<1x2x2x1xf32>
    %45 = arith.mulf %40, %44 : vector<1x2x2x1xf32>
    %cst_25 = arith.constant dense<0.000000e+00> : vector<1x2x2xf32>
    %46 = vector.multi_reduction <add>, %43, %cst_25 [3] : vector<1x2x2x128xf32> to vector<1x2x2xf32>
    %47 = vector.shape_cast %46 : vector<1x2x2xf32> to vector<1x2x2x1xf32>
    %48 = arith.addf %45, %47 : vector<1x2x2x1xf32>
    %c0_26 = arith.constant 0 : index
    %c0_27 = arith.constant 0 : index
    %c0_28 = arith.constant 0 : index
    %c0_29 = arith.constant 0 : index
    %49 = vector.load %arg8[%c0_26, %c0_27, %c0_28, %c0_29] : memref<1x2x2x1xf32, #tpu.memory_space<vmem>>, vector<1x2x2x1xf32>
    tpu.vector_store %arg8[%c0_26, %c0_27, %c0_28, %c0_29], %48 {strides = array<i32>} : memref<1x2x2x1xf32, #tpu.memory_space<vmem>>, vector<1x2x2x1xf32>,
    %50 = vector.shape_cast %43 : vector<1x2x2x128xf32> to vector<2x2x128xf32>
    %51 = arith.truncf %50 : vector<2x2x128xf32> to vector<2x2x128xbf16>
    "tpu.trace_start"() <{level = 10 : i32, message = "zgs,zsd->zgd"}> : () -> ()
    %cst_30 = arith.constant dense<0.000000e+00> : vector<2x2x128xf32>
    %52 = tpu.matmul %51, %18, %cst_30 {dimension_numbers = #tpu.dot_dimension_numbers<[2], [1], [1], [2], [0, 0, 0, 1, 1, 2], [0], [0]>} : vector<2x2x128xbf16>, vector<2x128x128xbf16>, vector<2x2x128xf32> -> vector<2x2x128xf32>
    "tpu.trace_stop"() : () -> ()
    %53 = vector.shape_cast %52 : vector<2x2x128xf32> to vector<1x2x2x128xf32>
    %c0_31 = arith.constant 0 : index
    %c0_32 = arith.constant 0 : index
    %c0_33 = arith.constant 0 : index
    %c0_34 = arith.constant 0 : index
    %54 = vector.load %arg9[%c0_31, %c0_32, %c0_33, %c0_34] : memref<1x2x2x128xf32, #tpu.memory_space<vmem>>, vector<1x2x2x128xf32>
    %55 = vector.broadcast %40 : vector<1x2x2x1xf32> to vector<1x2x2x128xf32>
    %56 = arith.mulf %55, %54 : vector<1x2x2x128xf32>
    %57 = arith.addf %56, %53 : vector<1x2x2x128xf32>
    %c0_35 = arith.constant 0 : index
    %c0_36 = arith.constant 0 : index
    %c0_37 = arith.constant 0 : index
    %c0_38 = arith.constant 0 : index
    %58 = vector.load %arg9[%c0_35, %c0_36, %c0_37, %c0_38] : memref<1x2x2x128xf32, #tpu.memory_space<vmem>>, vector<1x2x2x128xf32>
    tpu.vector_store %arg9[%c0_35, %c0_36, %c0_37, %c0_38], %57 {strides = array<i32>} : memref<1x2x2x128xf32, #tpu.memory_space<vmem>>, vector<1x2x2x128xf32>,
    %c0_39 = arith.constant 0 : index
    %c0_40 = arith.constant 0 : index
    %c0_41 = arith.constant 0 : index
    %c0_42 = arith.constant 0 : index
    %59 = vector.load %arg7[%c0_39, %c0_40, %c0_41, %c0_42] : memref<1x2x2x1xf32, #tpu.memory_space<vmem>>, vector<1x2x2x1xf32>
    tpu.vector_store %arg7[%c0_39, %c0_40, %c0_41, %c0_42], %38 {strides = array<i32>} : memref<1x2x2x1xf32, #tpu.memory_space<vmem>>, vector<1x2x2x1xf32>,
    %c1_i32_43 = arith.constant 1 : i32
    %60 = arith.cmpi eq, %arg1, %c1_i32_43 : i32
    %61 = arith.extui %60 : i1 to i32
    %c0_i32_44 = arith.constant 0 : i32
    %62 = arith.cmpi ne, %61, %c0_i32_44 : i32
    scf.if %62 {
      %c0_45 = arith.constant 0 : index
      %c0_46 = arith.constant 0 : index
      %c0_47 = arith.constant 0 : index
      %c0_48 = arith.constant 0 : index
      %63 = vector.load %arg8[%c0_45, %c0_46, %c0_47, %c0_48] : memref<1x2x2x1xf32, #tpu.memory_space<vmem>>, vector<1x2x2x1xf32>
      %64 = tpu.reciprocal %63 {approx = true} : vector<1x2x2x1xf32> -> vector<1x2x2x1xf32>
      %c0_49 = arith.constant 0 : index
      %c0_50 = arith.constant 0 : index
      %c0_51 = arith.constant 0 : index
      %c0_52 = arith.constant 0 : index
      %65 = vector.load %arg9[%c0_49, %c0_50, %c0_51, %c0_52] : memref<1x2x2x128xf32, #tpu.memory_space<vmem>>, vector<1x2x2x128xf32>
      %66 = vector.broadcast %64 : vector<1x2x2x1xf32> to vector<1x2x2x128xf32>
      %67 = arith.mulf %65, %66 : vector<1x2x2x128xf32>
      %c0_53 = arith.constant 0 : index
      %c0_54 = arith.constant 0 : index
      %c0_55 = arith.constant 0 : index
      %c0_56 = arith.constant 0 : index
      %68 = vector.load %arg6[%c0_53, %c0_54, %c0_55, %c0_56] : memref<1x2x2x128xf32, #tpu.memory_space<vmem>>, vector<1x2x2x128xf32>
      tpu.vector_store %arg6[%c0_53, %c0_54, %c0_55, %c0_56], %67 {strides = array<i32>} : memref<1x2x2x128xf32, #tpu.memory_space<vmem>>, vector<1x2x2x128xf32>,
    } else {
    }
    return
  }
  func.func @transform_0(%arg0: i32, %arg1: i32, %arg2: memref<2xi32, #tpu.memory_space<smem>>) -> (i32, i32, i32, i32) {
    %c0_i32 = arith.constant 0 : i32
    %c0_i32_0 = arith.constant 0 : i32
    %c0_i32_1 = arith.constant 0 : i32
    %c0_i32_2 = arith.constant 0 : i32
    return %arg0, %c0_i32, %c0_i32_0, %c0_i32_1 : i32, i32, i32, i32
  }
  func.func @transform_1(%arg0: i32, %arg1: i32, %arg2: memref<2xi32, #tpu.memory_space<smem>>) -> (i32, i32, i32, i32) {
    %c0_i32 = arith.constant 0 : i32
    %c0_i32_0 = arith.constant 0 : i32
    %c0_i32_1 = arith.constant 0 : i32
    return %arg0, %c0_i32, %arg1, %c0_i32_0 : i32, i32, i32, i32
  }
  func.func @transform_2(%arg0: i32, %arg1: i32, %arg2: memref<2xi32, #tpu.memory_space<smem>>) -> (i32, i32, i32, i32) {
    %c0_i32 = arith.constant 0 : i32
    %c0_i32_0 = arith.constant 0 : i32
    %c0_i32_1 = arith.constant 0 : i32
    return %arg0, %c0_i32, %arg1, %c0_i32_0 : i32, i32, i32, i32
  }
  func.func @transform_3(%arg0: i32, %arg1: i32, %arg2: memref<2xi32, #tpu.memory_space<smem>>) -> (i32, i32, i32, i32) {
    %c0_i32 = arith.constant 0 : i32
    %c0_i32_0 = arith.constant 0 : i32
    %c0_i32_1 = arith.constant 0 : i32
    %c0_i32_2 = arith.constant 0 : i32
    return %arg0, %c0_i32, %c0_i32_0, %c0_i32_1 : i32, i32, i32, i32
  }
}

</mosaic_0001>

<llo_original>
// kernel: swiftkv_attention.1
$region0: #{swiftkv_attention.1}
  #allocation0 [shape = 'u32[]', space=smem, size = 0x4, offset = 0x4, fixed_abs, tag = 'smem constant byte address 0x4 - core index']
  #allocation1 [shape = 'u32[144,128]{1,0:T(1,128)}', space=vmem, size = 0x12000, scoped, tag = 'internal scratch']
  #allocation2 [shape = 'f32[1,2,2,1]{3,2,1,0:T(2,128)}', space=vmem, size = 0x800, scoped, tag = 'scratch operand']
  #allocation3 [shape = 'f32[1,2,2,1]{3,2,1,0:T(2,128)}', space=vmem, size = 0x800, scoped, tag = 'scratch operand']
  #allocation4 [shape = 'f32[1,2,2,128]{3,2,1,0:T(2,128)}', space=vmem, size = 0x800, scoped, tag = 'scratch operand']
  #allocation5 [shape = 's32[1]{0}', space=sflag, size = 0x4, scoped, tag = 'scoped memory for swiftkv_attention.1']
  #allocation6 [shape = 'u8[512]{0}', space=smem, size = 0x200, scoped, tag = 'prefetched SMEM operand 0']
  %s0 = inlined_call_operand.vmem [shape: s32[2], index: 0, kind: input, shape index: {}]
  %s1 = inlined_call_operand.vmem [shape: bf16[2,2,2,128], index: 1, kind: input, shape index: {}]
  %s2 = inlined_call_operand.vmem [shape: bf16[2,2,160,128], index: 2, kind: input, shape index: {}]
  %s3 = inlined_call_operand.vmem [shape: bf16[2,2,160,128], index: 3, kind: input, shape index: {}]
  %s4 = inlined_call_operand.vmem [shape: f32[2,2,2,128], index: 4, kind: output, shape index: {}]
  %s5 = sld [smem:[#allocation0]]
  $region177: #{swiftkv_attention.1} parent=0
    _
  %s7 = ssub.s32 1, %s5
  %s8 = scalar_select 0, %s7, %s5
  %s9 = sshll.u32 %s0, 4
  %s10 = int_to_ptr.vmem [resolvable:$true] %s9
  %12 = dma.vmem_to_smem %s10, 16, [#allocation6], [#allocation5]
  %13 = dma.done [#allocation5], 16
  %14 = sfence
  $region1: #{swiftkv_attention.1} parent=0
    #allocation7 [shape = 'u8[131072]{0}', space=vmem, size = 0x20000, scoped, tag = 'input window, operand 2']
    #allocation8 [shape = 'u8[131072]{0}', space=vmem, size = 0x20000, scoped, tag = 'input window, operand 3']
    loop: start=0, step=1, limit=6
    $region2: #{swiftkv_attention.1} parent=1 // loop_pre_header
      _
    $region3: #{swiftkv_attention.1} parent=1 // loop_header
      %s16 = sphi 0, %s20
      %p17 = scmp.ge.s32.totalorder %s16, 6
      %s23 = sphi 0, %s35
      %s24 = sphi 0, %s31
      %s25 = sphi 0, %s23
      %s26 = sphi 0, %s24
      %s27 = sphi 0, %s25
      %s28 = sphi 0, %s26
      %s38 = sphi 0, %s40
      %s41 = sphi 0, %s38
      %s42 = sphi 0, %s41
      %s58 = sphi 0, %s42
      %s66 = sphi 0, %s68
      %s69 = sphi 0, %s66
      %s70 = sphi 0, %s69
      %s86 = sphi 0, %s70
      %s94 = sphi 0, %s96
      %s97 = sphi 0, %s94
      %s98 = sphi 0, %s97
      %s114 = sphi 0, %s98
      %s120 = sphi 0, %s122
      %s123 = sphi 0, %s120
      %s124 = sphi 0, %s123
      %s140 = sphi 0, %s124
    $region4: #{swiftkv_attention.1} parent=1 // loop_header_branch
      %19 = sbr.rel (%p17) target = $region8
    $region5: #{swiftkv_attention.1} parent=1 // loop_body
      %s21 = ssub.s32 %s16, 1
      %s22 = ssub.s32 %s16, 2
      %s29 = sadd.s32 1, %s24
      %p30 = scmp.ge.s32.totalorder %s29, 2
      %s31 = scalar_select %p30, 0, %s29
      %s32 = sadd.s32 1, %s23
      %s33 = scalar_select %p30, %s32, %s23
      %p34 = scmp.ge.s32.totalorder %s33, 2
      %s35 = scalar_select %p34, 0, %s33
      %s36 = ssub.s32 %s23, %s35
      %p37 = scmp.eq.s32.totalorder %s36, 0
      %s39 = sadd.s32 %s38, 1
      %s40 = scalar_select %p37, %s38, %s39
      %p43 = pneg %p37
      %p44 = scmp.eq.s32.totalorder %s16, 3
      %p45 = por %p43, %p44
      %p46 = scmp.ne.s32.totalorder %s38, %s41
      %p47 = scmp.eq.s32.totalorder %s16, 0
      %p48 = por %p46, %p47
      %p49 = scmp.ne.s32.totalorder %s38, %s41
      %p50 = scmp.eq.s32.totalorder %s21, 3
      %p51 = por %p49, %p50
      %p52 = scmp.ne.s32.totalorder %s41, %s42
      %p53 = scmp.eq.s32.totalorder %s21, 0
      %p54 = por %p52, %p53
      %p55 = scmp.ne.s32.totalorder %s41, %s42
      %p56 = scmp.eq.s32.totalorder %s22, 3
      %p57 = por %p55, %p56
      %p59 = scmp.ne.s32.totalorder %s42, %s58
      %p60 = scmp.eq.s32.totalorder %s22, 0
      %p61 = por %p59, %p60
      %s62 = ssub.s32 %s23, %s35
      %s63 = ssub.s32 %s24, %s31
      %s64 = sor.u32 %s62, %s63
      %p65 = scmp.eq.s32.totalorder %s64, 0
      %s67 = sadd.s32 %s66, 1
      %s68 = scalar_select %p65, %s66, %s67
      %p71 = pneg %p65
      %p72 = scmp.eq.s32.totalorder %s16, 3
      %p73 = por %p71, %p72
      %p74 = scmp.ne.s32.totalorder %s66, %s69
      %p75 = scmp.eq.s32.totalorder %s16, 0
      %p76 = por %p74, %p75
      %p77 = scmp.ne.s32.totalorder %s66, %s69
      %p78 = scmp.eq.s32.totalorder %s21, 3
      %p79 = por %p77, %p78
      %p80 = scmp.ne.s32.totalorder %s69, %s70
      %p81 = scmp.eq.s32.totalorder %s21, 0
      %p82 = por %p80, %p81
      %p83 = scmp.ne.s32.totalorder %s69, %s70
      %p84 = scmp.eq.s32.totalorder %s22, 3
      %p85 = por %p83, %p84
      %p87 = scmp.ne.s32.totalorder %s70, %s86
      %p88 = scmp.eq.s32.totalorder %s22, 0
      %p89 = por %p87, %p88
      %s90 = ssub.s32 %s23, %s35
      %s91 = ssub.s32 %s24, %s31
      %s92 = sor.u32 %s90, %s91
      %p93 = scmp.eq.s32.totalorder %s92, 0
      %s95 = sadd.s32 %s94, 1
      %s96 = scalar_select %p93, %s94, %s95
      %p99 = pneg %p93
      %p100 = scmp.eq.s32.totalorder %s16, 3
      %p101 = por %p99, %p100
      %p102 = scmp.ne.s32.totalorder %s94, %s97
      %p103 = scmp.eq.s32.totalorder %s16, 0
      %p104 = por %p102, %p103
      %p105 = scmp.ne.s32.totalorder %s94, %s97
      %p106 = scmp.eq.s32.totalorder %s21, 3
      %p107 = por %p105, %p106
      %p108 = scmp.ne.s32.totalorder %s97, %s98
      %p109 = scmp.eq.s32.totalorder %s21, 0
      %p110 = por %p108, %p109
      %p111 = scmp.ne.s32.totalorder %s97, %s98
      %p112 = scmp.eq.s32.totalorder %s22, 3
      %p113 = por %p111, %p112
      %p115 = scmp.ne.s32.totalorder %s98, %s114
      %p116 = scmp.eq.s32.totalorder %s22, 0
      %p117 = por %p115, %p116
      %s118 = ssub.s32 %s23, %s35
      %p119 = scmp.eq.s32.totalorder %s118, 0
      %s121 = sadd.s32 %s120, 1
      %s122 = scalar_select %p119, %s120, %s121
      %p125 = pneg %p119
      %p126 = scmp.eq.s32.totalorder %s16, 3
      %p127 = por %p125, %p126
      %p128 = scmp.ne.s32.totalorder %s120, %s123
      %p129 = scmp.eq.s32.totalorder %s16, 0
      %p130 = por %p128, %p129
      %p131 = scmp.ne.s32.totalorder %s120, %s123
      %p132 = scmp.eq.s32.totalorder %s21, 3
      %p133 = por %p131, %p132
      %p134 = scmp.ne.s32.totalorder %s123, %s124
      %p135 = scmp.eq.s32.totalorder %s21, 0
      %p136 = por %p134, %p135
      %p137 = scmp.ne.s32.totalorder %s123, %s124
      %p138 = scmp.eq.s32.totalorder %s22, 3
      %p139 = por %p137, %p138
      %p141 = scmp.ne.s32.totalorder %s124, %s140
      %p142 = scmp.eq.s32.totalorder %s22, 0
      %p143 = por %p141, %p142
      %p144 = scmp.le.s32.totalorder 1, %s16
      %p145 = scmp.lt.s32.totalorder %s16, 5
      %p146 = pnand %p144, %p145
      %p147 = pneg %p146
      // Predicated region
      $region9: #{swiftkv_attention.1} parent=5 // pred_check
        _
      $region10: #{swiftkv_attention.1} parent=5 // pred_check_branch
        %149 = sbr.rel (%p146) target = $region12
      $region11: #{swiftkv_attention.1} parent=5 // pred_region
        %s150 = ssub.s32 %s16, 1
      $region12: #{swiftkv_attention.1} parent=5 // pred_fallthru
        _
      %p151 = scmp.lt.s32.totalorder %s16, 4
      // Predicated region
      $region13: #{swiftkv_attention.1} parent=5 // pred_check
        %p152 = pneg %p151
      $region14: #{swiftkv_attention.1} parent=5 // pred_check_branch
        %154 = sbr.rel (%p152) target = $region16
      $region15: #{swiftkv_attention.1} parent=5 // pred_region
        // Predicated region
        $region17: #{swiftkv_attention.1} parent=15 // pred_check
          %p155 = pneg %p48
        $region18: #{swiftkv_attention.1} parent=15 // pred_check_branch
          %157 = sbr.rel (%p155) target = $region20
        $region19: #{swiftkv_attention.1} parent=15 // pred_region
          %p158 = scmp.lt.s32.totalorder %s23, 1
          %s159 = scalar_select %p158, %s23, 1
          %s160 = smul.addr %s159, 2
          %s161 = scalar_lea.vmem %s1, %s160
        $region20: #{swiftkv_attention.1} parent=15 // pred_fallthru
          _
        // Predicated region
        $region21: #{swiftkv_attention.1} parent=15 // pred_check
          %p162 = pneg %p76
        $region22: #{swiftkv_attention.1} parent=15 // pred_check_branch
          %164 = sbr.rel (%p162) target = $region24
        $region23: #{swiftkv_attention.1} parent=15 // pred_region
          %s165 = sand.u32 %s66, 1
          %s166 = sand.u32 %s66, 1
          %s167 = smul.addr %s166, 128
          %s168 = scalar_lea.vmem [#allocation7], %s167
          %s169 = smul.u32 16, %s24
          %s170 = ssub.s32 20, %s169
          %p171 = scmp.lt.s32.totalorder %s170, 16
          %s172 = scalar_select %p171, %s170, 16
          %s173 = smul.u32 128, %s172
          %p174 = scmp.ne.s32.totalorder 0, %s173
          %s175 = smul.addr %s23, 40
          %s176 = sadd.s32 %s169, %s175
          %s177 = smul.addr %s176, 4
          %s178 = scalar_lea.vmem %s2, %s177
          // Predicated region
          $region25: #{swiftkv_attention.1} parent=23 // pred_check
            %p179 = pneg %p174
          $region26: #{swiftkv_attention.1} parent=23 // pred_check_branch
            %181 = sbr.rel (%p179) target = $region28
          $region27: #{swiftkv_attention.1} parent=23 // pred_region
            // Predicated region
            $region29: #{swiftkv_attention.1} parent=27 // pred_check
              _
            $region30: #{swiftkv_attention.1} parent=27 // pred_check_branch
              %183 = sbr.rel target = $region32
            $region31: #{swiftkv_attention.1} parent=27 // pred_region
              // Predicated region
              $region51: #{swiftkv_attention.1} parent=31 // pred_check
                _
              $region52: #{swiftkv_attention.1} parent=31 // pred_check_branch
                %297 = sbr.rel (0) target = $region54
              $region53: #{swiftkv_attention.1} parent=31 // pred_region
                %s298 = sshrl.u32 %s172, 4
                // While loop
                $region55: #{swiftkv_attention.1} parent=53 // loop_pre_header
                  _
                $region56: #{swiftkv_attention.1} parent=53 // loop_header
                  %s300 = sphi 0, %s302
                  %p301 = scmp.ge.s32.totalorder %s300, %s298
                  %s305 = sphi 0, %s310
                  %s306 = sphi %s178, %s313
                  %s307 = sphi %s168, %s314
                $region57: #{swiftkv_attention.1} parent=53 // loop_header_branch
                  %304 = sbr.rel (%p301) target = $region61
                $region58: #{swiftkv_attention.1} parent=53 // loop_body
                  %s308 = sadd.s32 1, %s305
                  %p309 = scmp.ge.s32.totalorder %s308, %s298
                  %s310 = scalar_select %p309, 0, %s308
                  %s311 = smul.u32 %s310, 64
                  %s312 = smul.u32 %s310, 64
                  %s313 = scalar_lea.vmem %s178, %s311
                  %s314 = scalar_lea.vmem %s168, %s312 [#allocation7]
                $region59: #{swiftkv_attention.1} parent=53 // loop_footer
                  %s302 = sadd.s32 %s300, 1
                $region60: #{swiftkv_attention.1} parent=53 // loop_footer_branch
                  %299 = sbr.rel target = $region56
                $region61: #{swiftkv_attention.1} parent=53 // loop_exit
                  _
                %s315 = sshrl.u32 %s172, 4
                %s316 = sand.u32 %s172, 15
                %s317 = smul.u32 %s315, 16
                %s318 = smul.u32 4, %s317
                %s319 = scalar_lea.vmem %s178, %s318
                %s320 = smul.u32 4, %s317
                %s321 = scalar_lea.vmem %s168, %s320 [#allocation7]
                // While loop
                $region62: #{swiftkv_attention.1} parent=53 // loop_pre_header
                  _
                $region63: #{swiftkv_attention.1} parent=53 // loop_header
                  %s323 = sphi 0, %s325
                  %p324 = scmp.ge.s32.totalorder %s323, %s316
                  %s328 = sphi 0, %s333
                  %s329 = sphi %s319, %s336
                  %s330 = sphi %s321, %s337
                $region64: #{swiftkv_attention.1} parent=53 // loop_header_branch
                  %327 = sbr.rel (%p324) target = $region68
                $region65: #{swiftkv_attention.1} parent=53 // loop_body
                  %s331 = sadd.s32 1, %s328
                  %p332 = scmp.ge.s32.totalorder %s331, %s316
                  %s333 = scalar_select %p332, 0, %s331
                  %s334 = smul.u32 %s333, 4
                  %s335 = smul.u32 %s333, 4
                  %s336 = scalar_lea.vmem %s319, %s334
                  %s337 = scalar_lea.vmem %s321, %s335 [#allocation7]
                $region66: #{swiftkv_attention.1} parent=53 // loop_footer
                  %s325 = sadd.s32 %s323, 1
                $region67: #{swiftkv_attention.1} parent=53 // loop_footer_branch
                  %322 = sbr.rel target = $region63
                $region68: #{swiftkv_attention.1} parent=53 // loop_exit
                  _
                %s339 = ssub.s32 16, 1
                %s340 = sshrl.u32 %s172, 4
                // While loop
                $region69: #{swiftkv_attention.1} parent=53 // loop_pre_header
                  _
                $region70: #{swiftkv_attention.1} parent=53 // loop_header
                  %s342 = sphi 0, %s344
                  %p343 = scmp.ge.s32.totalorder %s342, %s340
                  %s347 = sphi 0, %s416
                  %s348 = sphi %s178, %s419
                  %s349 = sphi %s168, %s420
                $region71: #{swiftkv_attention.1} parent=53 // loop_header_branch
                  %346 = sbr.rel (%p343) target = $region75
                $region72: #{swiftkv_attention.1} parent=53 // loop_body
                  %v350 = vld [vmem:[%s348] sm:%s339]
                  %351 = vst [vmem:[%s349] sm:%s339] %v350
                  %v352 = vld [vmem:[%s348 + $0x4] sm:%s339]
                  %353 = vst [vmem:[%s349 + $0x4] sm:%s339] %v352
                  %v354 = vld [vmem:[%s348 + $0x8] sm:%s339]
                  %355 = vst [vmem:[%s349 + $0x8] sm:%s339] %v354
                  %v356 = vld [vmem:[%s348 + $0xc] sm:%s339]
                  %357 = vst [vmem:[%s349 + $0xc] sm:%s339] %v356
                  %v358 = vld [vmem:[%s348 + $0x10] sm:%s339]
                  %359 = vst [vmem:[%s349 + $0x10] sm:%s339] %v358
                  %v360 = vld [vmem:[%s348 + $0x14] sm:%s339]
                  %361 = vst [vmem:[%s349 + $0x14] sm:%s339] %v360
                  %v362 = vld [vmem:[%s348 + $0x18] sm:%s339]
                  %363 = vst [vmem:[%s349 + $0x18] sm:%s339] %v362
                  %v364 = vld [vmem:[%s348 + $0x1c] sm:%s339]
                  %365 = vst [vmem:[%s349 + $0x1c] sm:%s339] %v364
                  %v366 = vld [vmem:[%s348 + $0x20] sm:%s339]
                  %367 = vst [vmem:[%s349 + $0x20] sm:%s339] %v366
                  %v368 = vld [vmem:[%s348 + $0x24] sm:%s339]
                  %369 = vst [vmem:[%s349 + $0x24] sm:%s339] %v368
                  %v370 = vld [vmem:[%s348 + $0x28] sm:%s339]
                  %371 = vst [vmem:[%s349 + $0x28] sm:%s339] %v370
                  %v372 = vld [vmem:[%s348 + $0x2c] sm:%s339]
                  %373 = vst [vmem:[%s349 + $0x2c] sm:%s339] %v372
                  %v374 = vld [vmem:[%s348 + $0x30] sm:%s339]
                  %375 = vst [vmem:[%s349 + $0x30] sm:%s339] %v374
                  %v376 = vld [vmem:[%s348 + $0x34] sm:%s339]
                  %377 = vst [vmem:[%s349 + $0x34] sm:%s339] %v376
                  %v378 = vld [vmem:[%s348 + $0x38] sm:%s339]
                  %379 = vst [vmem:[%s349 + $0x38] sm:%s339] %v378
                  %v380 = vld [vmem:[%s348 + $0x3c] sm:%s339]
                  %381 = vst [vmem:[%s349 + $0x3c] sm:%s339] %v380
                  %v382 = vld [vmem:[%s348 + $0x50] sm:%s339]
                  %383 = vst [vmem:[%s349 + $0x40] sm:%s339] %v382
                  %v384 = vld [vmem:[%s348 + $0x54] sm:%s339]
                  %385 = vst [vmem:[%s349 + $0x44] sm:%s339] %v384
                  %v386 = vld [vmem:[%s348 + $0x58] sm:%s339]
                  %387 = vst [vmem:[%s349 + $0x48] sm:%s339] %v386
                  %v388 = vld [vmem:[%s348 + $0x5c] sm:%s339]
                  %389 = vst [vmem:[%s349 + $0x4c] sm:%s339] %v388
                  %v390 = vld [vmem:[%s348 + $0x60] sm:%s339]
                  %391 = vst [vmem:[%s349 + $0x50] sm:%s339] %v390
                  %v392 = vld [vmem:[%s348 + $0x64] sm:%s339]
                  %393 = vst [vmem:[%s349 + $0x54] sm:%s339] %v392
                  %v394 = vld [vmem:[%s348 + $0x68] sm:%s339]
                  %395 = vst [vmem:[%s349 + $0x58] sm:%s339] %v394
                  %v396 = vld [vmem:[%s348 + $0x6c] sm:%s339]
                  %397 = vst [vmem:[%s349 + $0x5c] sm:%s339] %v396
                  %v398 = vld [vmem:[%s348 + $0x70] sm:%s339]
                  %399 = vst [vmem:[%s349 + $0x60] sm:%s339] %v398
                  %v400 = vld [vmem:[%s348 + $0x74] sm:%s339]
                  %401 = vst [vmem:[%s349 + $0x64] sm:%s339] %v400
                  %v402 = vld [vmem:[%s348 + $0x78] sm:%s339]
                  %403 = vst [vmem:[%s349 + $0x68] sm:%s339] %v402
                  %v404 = vld [vmem:[%s348 + $0x7c] sm:%s339]
                  %405 = vst [vmem:[%s349 + $0x6c] sm:%s339] %v404
                  %v406 = vld [vmem:[%s348 + $0x80] sm:%s339]
                  %407 = vst [vmem:[%s349 + $0x70] sm:%s339] %v406
                  %v408 = vld [vmem:[%s348 + $0x84] sm:%s339]
                  %409 = vst [vmem:[%s349 + $0x74] sm:%s339] %v408
                  %v410 = vld [vmem:[%s348 + $0x88] sm:%s339]
                  %411 = vst [vmem:[%s349 + $0x78] sm:%s339] %v410
                  %v412 = vld [vmem:[%s348 + $0x8c] sm:%s339]
                  %413 = vst [vmem:[%s349 + $0x7c] sm:%s339] %v412
                  %s414 = sadd.s32 1, %s347
                  %p415 = scmp.ge.s32.totalorder %s414, %s340
                  %s416 = scalar_select %p415, 0, %s414
                  %s417 = smul.u32 %s416, 64
                  %s418 = smul.u32 %s416, 64
                  %s419 = scalar_lea.vmem %s178, %s417
                  %s420 = scalar_lea.vmem %s168, %s418 [#allocation7]
                $region73: #{swiftkv_attention.1} parent=53 // loop_footer
                  %s344 = sadd.s32 %s342, 1
                $region74: #{swiftkv_attention.1} parent=53 // loop_footer_branch
                  %341 = sbr.rel target = $region70
                $region75: #{swiftkv_attention.1} parent=53 // loop_exit
                  _
                %s421 = sshrl.u32 %s172, 4
                %s422 = sand.u32 %s172, 15
                %s423 = smul.u32 %s421, 16
                %s424 = smul.u32 4, %s423
                %s425 = scalar_lea.vmem %s178, %s424
                %s426 = smul.u32 4, %s423
                %s427 = scalar_lea.vmem %s168, %s426 [#allocation7]
                // While loop
                $region76: #{swiftkv_attention.1} parent=53 // loop_pre_header
                  _
                $region77: #{swiftkv_attention.1} parent=53 // loop_header
                  %s429 = sphi 0, %s431
                  %p430 = scmp.ge.s32.totalorder %s429, %s422
                  %s434 = sphi 0, %s443
                  %s435 = sphi %s425, %s446
                  %s436 = sphi %s427, %s447
                $region78: #{swiftkv_attention.1} parent=53 // loop_header_branch
                  %433 = sbr.rel (%p430) target = $region82
                $region79: #{swiftkv_attention.1} parent=53 // loop_body
                  %v437 = vld [vmem:[%s435] sm:%s339]
                  %438 = vst [vmem:[%s436] sm:%s339] %v437
                  %v439 = vld [vmem:[%s435 + $0x50] sm:%s339]
                  %440 = vst [vmem:[%s436 + $0x40] sm:%s339] %v439
                  %s441 = sadd.s32 1, %s434
                  %p442 = scmp.ge.s32.totalorder %s441, %s422
                  %s443 = scalar_select %p442, 0, %s441
                  %s444 = smul.u32 %s443, 4
                  %s445 = smul.u32 %s443, 4
                  %s446 = scalar_lea.vmem %s425, %s444
                  %s447 = scalar_lea.vmem %s427, %s445 [#allocation7]
                $region80: #{swiftkv_attention.1} parent=53 // loop_footer
                  %s431 = sadd.s32 %s429, 1
                $region81: #{swiftkv_attention.1} parent=53 // loop_footer_branch
                  %428 = sbr.rel target = $region77
                $region82: #{swiftkv_attention.1} parent=53 // loop_exit
                  _
              $region54: #{swiftkv_attention.1} parent=31 // pred_fallthru
                _
            $region32: #{swiftkv_attention.1} parent=27 // pred_fallthru
              _
            // Predicated region
            $region33: #{swiftkv_attention.1} parent=27 // pred_check
              _
            $region34: #{swiftkv_attention.1} parent=27 // pred_check_branch
              %185 = sbr.rel (0) target = $region36
            $region35: #{swiftkv_attention.1} parent=27 // pred_region
              %s187 = ssub.s32 16, 1
              %s188 = sshrl.u32 %s172, 4
              // While loop
              $region37: #{swiftkv_attention.1} parent=35 // loop_pre_header
                _
              $region38: #{swiftkv_attention.1} parent=35 // loop_header
                %s190 = sphi 0, %s192
                %p191 = scmp.ge.s32.totalorder %s190, %s188
                %s195 = sphi 0, %s264
                %s196 = sphi %s178, %s267
                %s197 = sphi %s168, %s268
              $region39: #{swiftkv_attention.1} parent=35 // loop_header_branch
                %194 = sbr.rel (%p191) target = $region43
              $region40: #{swiftkv_attention.1} parent=35 // loop_body
                %v198 = vld [vmem:[%s196] sm:%s187]
                %199 = vst [vmem:[%s197] sm:%s187] %v198
                %v200 = vld [vmem:[%s196 + $0x4] sm:%s187]
                %201 = vst [vmem:[%s197 + $0x4] sm:%s187] %v200
                %v202 = vld [vmem:[%s196 + $0x8] sm:%s187]
                %203 = vst [vmem:[%s197 + $0x8] sm:%s187] %v202
                %v204 = vld [vmem:[%s196 + $0xc] sm:%s187]
                %205 = vst [vmem:[%s197 + $0xc] sm:%s187] %v204
                %v206 = vld [vmem:[%s196 + $0x10] sm:%s187]
                %207 = vst [vmem:[%s197 + $0x10] sm:%s187] %v206
                %v208 = vld [vmem:[%s196 + $0x14] sm:%s187]
                %209 = vst [vmem:[%s197 + $0x14] sm:%s187] %v208
                %v210 = vld [vmem:[%s196 + $0x18] sm:%s187]
                %211 = vst [vmem:[%s197 + $0x18] sm:%s187] %v210
                %v212 = vld [vmem:[%s196 + $0x1c] sm:%s187]
                %213 = vst [vmem:[%s197 + $0x1c] sm:%s187] %v212
                %v214 = vld [vmem:[%s196 + $0x20] sm:%s187]
                %215 = vst [vmem:[%s197 + $0x20] sm:%s187] %v214
                %v216 = vld [vmem:[%s196 + $0x24] sm:%s187]
                %217 = vst [vmem:[%s197 + $0x24] sm:%s187] %v216
                %v218 = vld [vmem:[%s196 + $0x28] sm:%s187]
                %219 = vst [vmem:[%s197 + $0x28] sm:%s187] %v218
                %v220 = vld [vmem:[%s196 + $0x2c] sm:%s187]
                %221 = vst [vmem:[%s197 + $0x2c] sm:%s187] %v220
                %v222 = vld [vmem:[%s196 + $0x30] sm:%s187]
                %223 = vst [vmem:[%s197 + $0x30] sm:%s187] %v222
                %v224 = vld [vmem:[%s196 + $0x34] sm:%s187]
                %225 = vst [vmem:[%s197 + $0x34] sm:%s187] %v224
                %v226 = vld [vmem:[%s196 + $0x38] sm:%s187]
                %227 = vst [vmem:[%s197 + $0x38] sm:%s187] %v226
                %v228 = vld [vmem:[%s196 + $0x3c] sm:%s187]
                %229 = vst [vmem:[%s197 + $0x3c] sm:%s187] %v228
                %v230 = vld [vmem:[%s196 + $0x50] sm:%s187]
                %231 = vst [vmem:[%s197 + $0x40] sm:%s187] %v230
                %v232 = vld [vmem:[%s196 + $0x54] sm:%s187]
                %233 = vst [vmem:[%s197 + $0x44] sm:%s187] %v232
                %v234 = vld [vmem:[%s196 + $0x58] sm:%s187]
                %235 = vst [vmem:[%s197 + $0x48] sm:%s187] %v234
                %v236 = vld [vmem:[%s196 + $0x5c] sm:%s187]
                %237 = vst [vmem:[%s197 + $0x4c] sm:%s187] %v236
                %v238 = vld [vmem:[%s196 + $0x60] sm:%s187]
                %239 = vst [vmem:[%s197 + $0x50] sm:%s187] %v238
                %v240 = vld [vmem:[%s196 + $0x64] sm:%s187]
                %241 = vst [vmem:[%s197 + $0x54] sm:%s187] %v240
                %v242 = vld [vmem:[%s196 + $0x68] sm:%s187]
                %243 = vst [vmem:[%s197 + $0x58] sm:%s187] %v242
                %v244 = vld [vmem:[%s196 + $0x6c] sm:%s187]
                %245 = vst [vmem:[%s197 + $0x5c] sm:%s187] %v244
                %v246 = vld [vmem:[%s196 + $0x70] sm:%s187]
                %247 = vst [vmem:[%s197 + $0x60] sm:%s187] %v246
                %v248 = vld [vmem:[%s196 + $0x74] sm:%s187]
                %249 = vst [vmem:[%s197 + $0x64] sm:%s187] %v248
                %v250 = vld [vmem:[%s196 + $0x78] sm:%s187]
                %251 = vst [vmem:[%s197 + $0x68] sm:%s187] %v250
                %v252 = vld [vmem:[%s196 + $0x7c] sm:%s187]
                %253 = vst [vmem:[%s197 + $0x6c] sm:%s187] %v252
                %v254 = vld [vmem:[%s196 + $0x80] sm:%s187]
                %255 = vst [vmem:[%s197 + $0x70] sm:%s187] %v254
                %v256 = vld [vmem:[%s196 + $0x84] sm:%s187]
                %257 = vst [vmem:[%s197 + $0x74] sm:%s187] %v256
                %v258 = vld [vmem:[%s196 + $0x88] sm:%s187]
                %259 = vst [vmem:[%s197 + $0x78] sm:%s187] %v258
                %v260 = vld [vmem:[%s196 + $0x8c] sm:%s187]
                %261 = vst [vmem:[%s197 + $0x7c] sm:%s187] %v260
                %s262 = sadd.s32 1, %s195
                %p263 = scmp.ge.s32.totalorder %s262, %s188
                %s264 = scalar_select %p263, 0, %s262
                %s265 = smul.u32 %s264, 64
                %s266 = smul.u32 %s264, 64
                %s267 = scalar_lea.vmem %s178, %s265
                %s268 = scalar_lea.vmem %s168, %s266 [#allocation7]
              $region41: #{swiftkv_attention.1} parent=35 // loop_footer
                %s192 = sadd.s32 %s190, 1
              $region42: #{swiftkv_attention.1} parent=35 // loop_footer_branch
                %189 = sbr.rel target = $region38
              $region43: #{swiftkv_attention.1} parent=35 // loop_exit
                _
              %s269 = sshrl.u32 %s172, 4
              %s270 = sand.u32 %s172, 15
              %s271 = smul.u32 %s269, 16
              %s272 = smul.u32 4, %s271
              %s273 = scalar_lea.vmem %s178, %s272
              %s274 = smul.u32 4, %s271
              %s275 = scalar_lea.vmem %s168, %s274 [#allocation7]
              // While loop
              $region44: #{swiftkv_attention.1} parent=35 // loop_pre_header
                _
              $region45: #{swiftkv_attention.1} parent=35 // loop_header
                %s277 = sphi 0, %s279
                %p278 = scmp.ge.s32.totalorder %s277, %s270
                %s282 = sphi 0, %s291
                %s283 = sphi %s273, %s294
                %s284 = sphi %s275, %s295
              $region46: #{swiftkv_attention.1} parent=35 // loop_header_branch
                %281 = sbr.rel (%p278) target = $region50
              $region47: #{swiftkv_attention.1} parent=35 // loop_body
                %v285 = vld [vmem:[%s283] sm:%s187]
                %286 = vst [vmem:[%s284] sm:%s187] %v285
                %v287 = vld [vmem:[%s283 + $0x50] sm:%s187]
                %288 = vst [vmem:[%s284 + $0x40] sm:%s187] %v287
                %s289 = sadd.s32 1, %s282
                %p290 = scmp.ge.s32.totalorder %s289, %s270
                %s291 = scalar_select %p290, 0, %s289
                %s292 = smul.u32 %s291, 4
                %s293 = smul.u32 %s291, 4
                %s294 = scalar_lea.vmem %s273, %s292
                %s295 = scalar_lea.vmem %s275, %s293 [#allocation7]
              $region48: #{swiftkv_attention.1} parent=35 // loop_footer
                %s279 = sadd.s32 %s277, 1
              $region49: #{swiftkv_attention.1} parent=35 // loop_footer_branch
                %276 = sbr.rel target = $region45
              $region50: #{swiftkv_attention.1} parent=35 // loop_exit
                _
            $region36: #{swiftkv_attention.1} parent=27 // pred_fallthru
              _
          $region28: #{swiftkv_attention.1} parent=23 // pred_fallthru
            _
          %448 = vnop
        $region24: #{swiftkv_attention.1} parent=15 // pred_fallthru
          _
        // Predicated region
        $region83: #{swiftkv_attention.1} parent=15 // pred_check
          %p449 = pneg %p104
        $region84: #{swiftkv_attention.1} parent=15 // pred_check_branch
          %451 = sbr.rel (%p449) target = $region86
        $region85: #{swiftkv_attention.1} parent=15 // pred_region
          %s452 = sand.u32 %s94, 1
          %s453 = sand.u32 %s94, 1
          %s454 = smul.addr %s453, 128
          %s455 = scalar_lea.vmem [#allocation8], %s454
          %s456 = smul.u32 16, %s24
          %s457 = ssub.s32 20, %s456
          %p458 = scmp.lt.s32.totalorder %s457, 16
          %s459 = scalar_select %p458, %s457, 16
          %s460 = smul.u32 128, %s459
          %p461 = scmp.ne.s32.totalorder 0, %s460
          %s462 = smul.addr %s23, 40
          %s463 = sadd.s32 %s456, %s462
          %s464 = smul.addr %s463, 4
          %s465 = scalar_lea.vmem %s3, %s464
          // Predicated region
          $region87: #{swiftkv_attention.1} parent=85 // pred_check
            %p466 = pneg %p461
          $region88: #{swiftkv_attention.1} parent=85 // pred_check_branch
            %468 = sbr.rel (%p466) target = $region90
          $region89: #{swiftkv_attention.1} parent=85 // pred_region
            // Predicated region
            $region91: #{swiftkv_attention.1} parent=89 // pred_check
              _
            $region92: #{swiftkv_attention.1} parent=89 // pred_check_branch
              %470 = sbr.rel target = $region94
            $region93: #{swiftkv_attention.1} parent=89 // pred_region
              // Predicated region
              $region113: #{swiftkv_attention.1} parent=93 // pred_check
                _
              $region114: #{swiftkv_attention.1} parent=93 // pred_check_branch
                %584 = sbr.rel (0) target = $region116
              $region115: #{swiftkv_attention.1} parent=93 // pred_region
                %s585 = sshrl.u32 %s459, 4
                // While loop
                $region117: #{swiftkv_attention.1} parent=115 // loop_pre_header
                  _
                $region118: #{swiftkv_attention.1} parent=115 // loop_header
                  %s587 = sphi 0, %s589
                  %p588 = scmp.ge.s32.totalorder %s587, %s585
                  %s592 = sphi 0, %s597
                  %s593 = sphi %s465, %s600
                  %s594 = sphi %s455, %s601
                $region119: #{swiftkv_attention.1} parent=115 // loop_header_branch
                  %591 = sbr.rel (%p588) target = $region123
                $region120: #{swiftkv_attention.1} parent=115 // loop_body
                  %s595 = sadd.s32 1, %s592
                  %p596 = scmp.ge.s32.totalorder %s595, %s585
                  %s597 = scalar_select %p596, 0, %s595
                  %s598 = smul.u32 %s597, 64
                  %s599 = smul.u32 %s597, 64
                  %s600 = scalar_lea.vmem %s465, %s598
                  %s601 = scalar_lea.vmem %s455, %s599 [#allocation8]
                $region121: #{swiftkv_attention.1} parent=115 // loop_footer
                  %s589 = sadd.s32 %s587, 1
                $region122: #{swiftkv_attention.1} parent=115 // loop_footer_branch
                  %586 = sbr.rel target = $region118
                $region123: #{swiftkv_attention.1} parent=115 // loop_exit
                  _
                %s602 = sshrl.u32 %s459, 4
                %s603 = sand.u32 %s459, 15
                %s604 = smul.u32 %s602, 16
                %s605 = smul.u32 4, %s604
                %s606 = scalar_lea.vmem %s465, %s605
                %s607 = smul.u32 4, %s604
                %s608 = scalar_lea.vmem %s455, %s607 [#allocation8]
                // While loop
                $region124: #{swiftkv_attention.1} parent=115 // loop_pre_header
                  _
                $region125: #{swiftkv_attention.1} parent=115 // loop_header
                  %s610 = sphi 0, %s612
                  %p611 = scmp.ge.s32.totalorder %s610, %s603
                  %s615 = sphi 0, %s620
                  %s616 = sphi %s606, %s623
                  %s617 = sphi %s608, %s624
                $region126: #{swiftkv_attention.1} parent=115 // loop_header_branch
                  %614 = sbr.rel (%p611) target = $region130
                $region127: #{swiftkv_attention.1} parent=115 // loop_body
                  %s618 = sadd.s32 1, %s615
                  %p619 = scmp.ge.s32.totalorder %s618, %s603
                  %s620 = scalar_select %p619, 0, %s618
                  %s621 = smul.u32 %s620, 4
                  %s622 = smul.u32 %s620, 4
                  %s623 = scalar_lea.vmem %s606, %s621
                  %s624 = scalar_lea.vmem %s608, %s622 [#allocation8]
                $region128: #{swiftkv_attention.1} parent=115 // loop_footer
                  %s612 = sadd.s32 %s610, 1
                $region129: #{swiftkv_attention.1} parent=115 // loop_footer_branch
                  %609 = sbr.rel target = $region125
                $region130: #{swiftkv_attention.1} parent=115 // loop_exit
                  _
                %s626 = ssub.s32 16, 1
                %s627 = sshrl.u32 %s459, 4
                // While loop
                $region131: #{swiftkv_attention.1} parent=115 // loop_pre_header
                  _
                $region132: #{swiftkv_attention.1} parent=115 // loop_header
                  %s629 = sphi 0, %s631
                  %p630 = scmp.ge.s32.totalorder %s629, %s627
                  %s634 = sphi 0, %s703
                  %s635 = sphi %s465, %s706
                  %s636 = sphi %s455, %s707
                $region133: #{swiftkv_attention.1} parent=115 // loop_header_branch
                  %633 = sbr.rel (%p630) target = $region137
                $region134: #{swiftkv_attention.1} parent=115 // loop_body
                  %v637 = vld [vmem:[%s635] sm:%s626]
                  %638 = vst [vmem:[%s636] sm:%s626] %v637
                  %v639 = vld [vmem:[%s635 + $0x4] sm:%s626]
                  %640 = vst [vmem:[%s636 + $0x4] sm:%s626] %v639
                  %v641 = vld [vmem:[%s635 + $0x8] sm:%s626]
                  %642 = vst [vmem:[%s636 + $0x8] sm:%s626] %v641
                  %v643 = vld [vmem:[%s635 + $0xc] sm:%s626]
                  %644 = vst [vmem:[%s636 + $0xc] sm:%s626] %v643
                  %v645 = vld [vmem:[%s635 + $0x10] sm:%s626]
                  %646 = vst [vmem:[%s636 + $0x10] sm:%s626] %v645
                  %v647 = vld [vmem:[%s635 + $0x14] sm:%s626]
                  %648 = vst [vmem:[%s636 + $0x14] sm:%s626] %v647
                  %v649 = vld [vmem:[%s635 + $0x18] sm:%s626]
                  %650 = vst [vmem:[%s636 + $0x18] sm:%s626] %v649
                  %v651 = vld [vmem:[%s635 + $0x1c] sm:%s626]
                  %652 = vst [vmem:[%s636 + $0x1c] sm:%s626] %v651
                  %v653 = vld [vmem:[%s635 + $0x20] sm:%s626]
                  %654 = vst [vmem:[%s636 + $0x20] sm:%s626] %v653
                  %v655 = vld [vmem:[%s635 + $0x24] sm:%s626]
                  %656 = vst [vmem:[%s636 + $0x24] sm:%s626] %v655
                  %v657 = vld [vmem:[%s635 + $0x28] sm:%s626]
                  %658 = vst [vmem:[%s636 + $0x28] sm:%s626] %v657
                  %v659 = vld [vmem:[%s635 + $0x2c] sm:%s626]
                  %660 = vst [vmem:[%s636 + $0x2c] sm:%s626] %v659
                  %v661 = vld [vmem:[%s635 + $0x30] sm:%s626]
                  %662 = vst [vmem:[%s636 + $0x30] sm:%s626] %v661
                  %v663 = vld [vmem:[%s635 + $0x34] sm:%s626]
                  %664 = vst [vmem:[%s636 + $0x34] sm:%s626] %v663
                  %v665 = vld [vmem:[%s635 + $0x38] sm:%s626]
                  %666 = vst [vmem:[%s636 + $0x38] sm:%s626] %v665
                  %v667 = vld [vmem:[%s635 + $0x3c] sm:%s626]
                  %668 = vst [vmem:[%s636 + $0x3c] sm:%s626] %v667
                  %v669 = vld [vmem:[%s635 + $0x50] sm:%s626]
                  %670 = vst [vmem:[%s636 + $0x40] sm:%s626] %v669
                  %v671 = vld [vmem:[%s635 + $0x54] sm:%s626]
                  %672 = vst [vmem:[%s636 + $0x44] sm:%s626] %v671
                  %v673 = vld [vmem:[%s635 + $0x58] sm:%s626]
                  %674 = vst [vmem:[%s636 + $0x48] sm:%s626] %v673
                  %v675 = vld [vmem:[%s635 + $0x5c] sm:%s626]
                  %676 = vst [vmem:[%s636 + $0x4c] sm:%s626] %v675
                  %v677 = vld [vmem:[%s635 + $0x60] sm:%s626]
                  %678 = vst [vmem:[%s636 + $0x50] sm:%s626] %v677
                  %v679 = vld [vmem:[%s635 + $0x64] sm:%s626]
                  %680 = vst [vmem:[%s636 + $0x54] sm:%s626] %v679
                  %v681 = vld [vmem:[%s635 + $0x68] sm:%s626]
                  %682 = vst [vmem:[%s636 + $0x58] sm:%s626] %v681
                  %v683 = vld [vmem:[%s635 + $0x6c] sm:%s626]
                  %684 = vst [vmem:[%s636 + $0x5c] sm:%s626] %v683
                  %v685 = vld [vmem:[%s635 + $0x70] sm:%s626]
                  %686 = vst [vmem:[%s636 + $0x60] sm:%s626] %v685
                  %v687 = vld [vmem:[%s635 + $0x74] sm:%s626]
                  %688 = vst [vmem:[%s636 + $0x64] sm:%s626] %v687
                  %v689 = vld [vmem:[%s635 + $0x78] sm:%s626]
                  %690 = vst [vmem:[%s636 + $0x68] sm:%s626] %v689
                  %v691 = vld [vmem:[%s635 + $0x7c] sm:%s626]
                  %692 = vst [vmem:[%s636 + $0x6c] sm:%s626] %v691
                  %v693 = vld [vmem:[%s635 + $0x80] sm:%s626]
                  %694 = vst [vmem:[%s636 + $0x70] sm:%s626] %v693
                  %v695 = vld [vmem:[%s635 + $0x84] sm:%s626]
                  %696 = vst [vmem:[%s636 + $0x74] sm:%s626] %v695
                  %v697 = vld [vmem:[%s635 + $0x88] sm:%s626]
                  %698 = vst [vmem:[%s636 + $0x78] sm:%s626] %v697
                  %v699 = vld [vmem:[%s635 + $0x8c] sm:%s626]
                  %700 = vst [vmem:[%s636 + $0x7c] sm:%s626] %v699
                  %s701 = sadd.s32 1, %s634
                  %p702 = scmp.ge.s32.totalorder %s701, %s627
                  %s703 = scalar_select %p702, 0, %s701
                  %s704 = smul.u32 %s703, 64
                  %s705 = smul.u32 %s703, 64
                  %s706 = scalar_lea.vmem %s465, %s704
                  %s707 = scalar_lea.vmem %s455, %s705 [#allocation8]
                $region135: #{swiftkv_attention.1} parent=115 // loop_footer
                  %s631 = sadd.s32 %s629, 1
                $region136: #{swiftkv_attention.1} parent=115 // loop_footer_branch
                  %628 = sbr.rel target = $region132
                $region137: #{swiftkv_attention.1} parent=115 // loop_exit
                  _
                %s708 = sshrl.u32 %s459, 4
                %s709 = sand.u32 %s459, 15
                %s710 = smul.u32 %s708, 16
                %s711 = smul.u32 4, %s710
                %s712 = scalar_lea.vmem %s465, %s711
                %s713 = smul.u32 4, %s710
                %s714 = scalar_lea.vmem %s455, %s713 [#allocation8]
                // While loop
                $region138: #{swiftkv_attention.1} parent=115 // loop_pre_header
                  _
                $region139: #{swiftkv_attention.1} parent=115 // loop_header
                  %s716 = sphi 0, %s718
                  %p717 = scmp.ge.s32.totalorder %s716, %s709
                  %s721 = sphi 0, %s730
                  %s722 = sphi %s712, %s733
                  %s723 = sphi %s714, %s734
                $region140: #{swiftkv_attention.1} parent=115 // loop_header_branch
                  %720 = sbr.rel (%p717) target = $region144
                $region141: #{swiftkv_attention.1} parent=115 // loop_body
                  %v724 = vld [vmem:[%s722] sm:%s626]
                  %725 = vst [vmem:[%s723] sm:%s626] %v724
                  %v726 = vld [vmem:[%s722 + $0x50] sm:%s626]
                  %727 = vst [vmem:[%s723 + $0x40] sm:%s626] %v726
                  %s728 = sadd.s32 1, %s721
                  %p729 = scmp.ge.s32.totalorder %s728, %s709
                  %s730 = scalar_select %p729, 0, %s728
                  %s731 = smul.u32 %s730, 4
                  %s732 = smul.u32 %s730, 4
                  %s733 = scalar_lea.vmem %s712, %s731
                  %s734 = scalar_lea.vmem %s714, %s732 [#allocation8]
                $region142: #{swiftkv_attention.1} parent=115 // loop_footer
                  %s718 = sadd.s32 %s716, 1
                $region143: #{swiftkv_attention.1} parent=115 // loop_footer_branch
                  %715 = sbr.rel target = $region139
                $region144: #{swiftkv_attention.1} parent=115 // loop_exit
                  _
              $region116: #{swiftkv_attention.1} parent=93 // pred_fallthru
                _
            $region94: #{swiftkv_attention.1} parent=89 // pred_fallthru
              _
            // Predicated region
            $region95: #{swiftkv_attention.1} parent=89 // pred_check
              _
            $region96: #{swiftkv_attention.1} parent=89 // pred_check_branch
              %472 = sbr.rel (0) target = $region98
            $region97: #{swiftkv_attention.1} parent=89 // pred_region
              %s474 = ssub.s32 16, 1
              %s475 = sshrl.u32 %s459, 4
              // While loop
              $region99: #{swiftkv_attention.1} parent=97 // loop_pre_header
                _
              $region100: #{swiftkv_attention.1} parent=97 // loop_header
                %s477 = sphi 0, %s479
                %p478 = scmp.ge.s32.totalorder %s477, %s475
                %s482 = sphi 0, %s551
                %s483 = sphi %s465, %s554
                %s484 = sphi %s455, %s555
              $region101: #{swiftkv_attention.1} parent=97 // loop_header_branch
                %481 = sbr.rel (%p478) target = $region105
              $region102: #{swiftkv_attention.1} parent=97 // loop_body
                %v485 = vld [vmem:[%s483] sm:%s474]
                %486 = vst [vmem:[%s484] sm:%s474] %v485
                %v487 = vld [vmem:[%s483 + $0x4] sm:%s474]
                %488 = vst [vmem:[%s484 + $0x4] sm:%s474] %v487
                %v489 = vld [vmem:[%s483 + $0x8] sm:%s474]
                %490 = vst [vmem:[%s484 + $0x8] sm:%s474] %v489
                %v491 = vld [vmem:[%s483 + $0xc] sm:%s474]
                %492 = vst [vmem:[%s484 + $0xc] sm:%s474] %v491
                %v493 = vld [vmem:[%s483 + $0x10] sm:%s474]
                %494 = vst [vmem:[%s484 + $0x10] sm:%s474] %v493
                %v495 = vld [vmem:[%s483 + $0x14] sm:%s474]
                %496 = vst [vmem:[%s484 + $0x14] sm:%s474] %v495
                %v497 = vld [vmem:[%s483 + $0x18] sm:%s474]
                %498 = vst [vmem:[%s484 + $0x18] sm:%s474] %v497
                %v499 = vld [vmem:[%s483 + $0x1c] sm:%s474]
                %500 = vst [vmem:[%s484 + $0x1c] sm:%s474] %v499
                %v501 = vld [vmem:[%s483 + $0x20] sm:%s474]
                %502 = vst [vmem:[%s484 + $0x20] sm:%s474] %v501
                %v503 = vld [vmem:[%s483 + $0x24] sm:%s474]
                %504 = vst [vmem:[%s484 + $0x24] sm:%s474] %v503
                %v505 = vld [vmem:[%s483 + $0x28] sm:%s474]
                %506 = vst [vmem:[%s484 + $0x28] sm:%s474] %v505
                %v507 = vld [vmem:[%s483 + $0x2c] sm:%s474]
                %508 = vst [vmem:[%s484 + $0x2c] sm:%s474] %v507
                %v509 = vld [vmem:[%s483 + $0x30] sm:%s474]
                %510 = vst [vmem:[%s484 + $0x30] sm:%s474] %v509
                %v511 = vld [vmem:[%s483 + $0x34] sm:%s474]
                %512 = vst [vmem:[%s484 + $0x34] sm:%s474] %v511
                %v513 = vld [vmem:[%s483 + $0x38] sm:%s474]
                %514 = vst [vmem:[%s484 + $0x38] sm:%s474] %v513
                %v515 = vld [vmem:[%s483 + $0x3c] sm:%s474]
                %516 = vst [vmem:[%s484 + $0x3c] sm:%s474] %v515
                %v517 = vld [vmem:[%s483 + $0x50] sm:%s474]
                %518 = vst [vmem:[%s484 + $0x40] sm:%s474] %v517
                %v519 = vld [vmem:[%s483 + $0x54] sm:%s474]
                %520 = vst [vmem:[%s484 + $0x44] sm:%s474] %v519
                %v521 = vld [vmem:[%s483 + $0x58] sm:%s474]
                %522 = vst [vmem:[%s484 + $0x48] sm:%s474] %v521
                %v523 = vld [vmem:[%s483 + $0x5c] sm:%s474]
                %524 = vst [vmem:[%s484 + $0x4c] sm:%s474] %v523
                %v525 = vld [vmem:[%s483 + $0x60] sm:%s474]
                %526 = vst [vmem:[%s484 + $0x50] sm:%s474] %v525
                %v527 = vld [vmem:[%s483 + $0x64] sm:%s474]
                %528 = vst [vmem:[%s484 + $0x54] sm:%s474] %v527
                %v529 = vld [vmem:[%s483 + $0x68] sm:%s474]
                %530 = vst [vmem:[%s484 + $0x58] sm:%s474] %v529
                %v531 = vld [vmem:[%s483 + $0x6c] sm:%s474]
                %532 = vst [vmem:[%s484 + $0x5c] sm:%s474] %v531
                %v533 = vld [vmem:[%s483 + $0x70] sm:%s474]
                %534 = vst [vmem:[%s484 + $0x60] sm:%s474] %v533
                %v535 = vld [vmem:[%s483 + $0x74] sm:%s474]
                %536 = vst [vmem:[%s484 + $0x64] sm:%s474] %v535
                %v537 = vld [vmem:[%s483 + $0x78] sm:%s474]
                %538 = vst [vmem:[%s484 + $0x68] sm:%s474] %v537
                %v539 = vld [vmem:[%s483 + $0x7c] sm:%s474]
                %540 = vst [vmem:[%s484 + $0x6c] sm:%s474] %v539
                %v541 = vld [vmem:[%s483 + $0x80] sm:%s474]
                %542 = vst [vmem:[%s484 + $0x70] sm:%s474] %v541
                %v543 = vld [vmem:[%s483 + $0x84] sm:%s474]
                %544 = vst [vmem:[%s484 + $0x74] sm:%s474] %v543
                %v545 = vld [vmem:[%s483 + $0x88] sm:%s474]
                %546 = vst [vmem:[%s484 + $0x78] sm:%s474] %v545
                %v547 = vld [vmem:[%s483 + $0x8c] sm:%s474]
                %548 = vst [vmem:[%s484 + $0x7c] sm:%s474] %v547
                %s549 = sadd.s32 1, %s482
                %p550 = scmp.ge.s32.totalorder %s549, %s475
                %s551 = scalar_select %p550, 0, %s549
                %s552 = smul.u32 %s551, 64
                %s553 = smul.u32 %s551, 64
                %s554 = scalar_lea.vmem %s465, %s552
                %s555 = scalar_lea.vmem %s455, %s553 [#allocation8]
              $region103: #{swiftkv_attention.1} parent=97 // loop_footer
                %s479 = sadd.s32 %s477, 1
              $region104: #{swiftkv_attention.1} parent=97 // loop_footer_branch
                %476 = sbr.rel target = $region100
              $region105: #{swiftkv_attention.1} parent=97 // loop_exit
                _
              %s556 = sshrl.u32 %s459, 4
              %s557 = sand.u32 %s459, 15
              %s558 = smul.u32 %s556, 16
              %s559 = smul.u32 4, %s558
              %s560 = scalar_lea.vmem %s465, %s559
              %s561 = smul.u32 4, %s558
              %s562 = scalar_lea.vmem %s455, %s561 [#allocation8]
              // While loop
              $region106: #{swiftkv_attention.1} parent=97 // loop_pre_header
                _
              $region107: #{swiftkv_attention.1} parent=97 // loop_header
                %s564 = sphi 0, %s566
                %p565 = scmp.ge.s32.totalorder %s564, %s557
                %s569 = sphi 0, %s578
                %s570 = sphi %s560, %s581
                %s571 = sphi %s562, %s582
              $region108: #{swiftkv_attention.1} parent=97 // loop_header_branch
                %568 = sbr.rel (%p565) target = $region112
              $region109: #{swiftkv_attention.1} parent=97 // loop_body
                %v572 = vld [vmem:[%s570] sm:%s474]
                %573 = vst [vmem:[%s571] sm:%s474] %v572
                %v574 = vld [vmem:[%s570 + $0x50] sm:%s474]
                %575 = vst [vmem:[%s571 + $0x40] sm:%s474] %v574
                %s576 = sadd.s32 1, %s569
                %p577 = scmp.ge.s32.totalorder %s576, %s557
                %s578 = scalar_select %p577, 0, %s576
                %s579 = smul.u32 %s578, 4
                %s580 = smul.u32 %s578, 4
                %s581 = scalar_lea.vmem %s560, %s579
                %s582 = scalar_lea.vmem %s562, %s580 [#allocation8]
              $region110: #{swiftkv_attention.1} parent=97 // loop_footer
                %s566 = sadd.s32 %s564, 1
              $region111: #{swiftkv_attention.1} parent=97 // loop_footer_branch
                %563 = sbr.rel target = $region107
              $region112: #{swiftkv_attention.1} parent=97 // loop_exit
                _
            $region98: #{swiftkv_attention.1} parent=89 // pred_fallthru
              _
          $region90: #{swiftkv_attention.1} parent=85 // pred_fallthru
            _
          %735 = vnop
        $region86: #{swiftkv_attention.1} parent=15 // pred_fallthru
          _
      $region16: #{swiftkv_attention.1} parent=5 // pred_fallthru
        _
      %p736 = scmp.le.s32.totalorder 1, %s16
      %p737 = scmp.lt.s32.totalorder %s16, 5
      %p738 = pnand %p736, %p737
      %p739 = pneg %p738
      // Predicated region
      $region145: #{swiftkv_attention.1} parent=5 // pred_check
        _
      $region146: #{swiftkv_attention.1} parent=5 // pred_check_branch
        %741 = sbr.rel (%p738) target = $region148
      $region147: #{swiftkv_attention.1} parent=5 // pred_region
        %s742 = ssub.s32 %s16, 1
        %s743 = sand.u32 %s69, 1
        %s744 = sand.u32 %s69, 1
        %s745 = smul.addr %s744, 128
        %s746 = scalar_lea.vmem [#allocation7], %s745
        // Predicated region
        $region149: #{swiftkv_attention.1} parent=147 // pred_check
          %p747 = pneg %p82
        $region150: #{swiftkv_attention.1} parent=147 // pred_check_branch
          %749 = sbr.rel (%p747) target = $region152
        $region151: #{swiftkv_attention.1} parent=147 // pred_region
          _
        $region152: #{swiftkv_attention.1} parent=147 // pred_fallthru
          _
        %s750 = sand.u32 %s97, 1
        %s751 = sand.u32 %s97, 1
        %s752 = smul.addr %s751, 128
        %s753 = scalar_lea.vmem [#allocation8], %s752
        // Predicated region
        $region153: #{swiftkv_attention.1} parent=147 // pred_check
          %p754 = pneg %p110
        $region154: #{swiftkv_attention.1} parent=147 // pred_check_branch
          %756 = sbr.rel (%p754) target = $region156
        $region155: #{swiftkv_attention.1} parent=147 // pred_region
          _
        $region156: #{swiftkv_attention.1} parent=147 // pred_fallthru
          _
        %p757 = scmp.lt.s32.totalorder %s25, 1
        %s758 = scalar_select %p757, %s25, 1
        %s759 = smul.addr %s758, 2
        %s760 = scalar_lea.vmem %s1, %s759
        %p761 = pneg %p54
        %p762 = pneg %p51
        %s763 = sand.u32 %s69, 1
        %s764 = sand.u32 %s69, 1
        %s765 = smul.addr %s764, 128
        %s766 = scalar_lea.vmem [#allocation7], %s765
        %p767 = pneg %p82
        %p768 = pneg %p79
        %s769 = sand.u32 %s97, 1
        %s770 = sand.u32 %s97, 1
        %s771 = smul.addr %s770, 128
        %s772 = scalar_lea.vmem [#allocation8], %s771
        %p773 = pneg %p110
        %p774 = pneg %p107
        %p775 = pneg %p136
        %p776 = pneg %p133
        %p777 = scmp.lt.s32.totalorder %s25, 1
        %s778 = scalar_select %p777, %s25, 1
        %s779 = smul.addr %s778, 2
        %s780 = smul.addr %s779, 2
        %s781 = scalar_lea.vmem %s4, %s780
        %p782 = scmp.lt.s32.totalorder %s25, 1
        %s783 = scalar_select %p782, %s25, 1
        %s784 = smul.addr %s783, 2
        %s785 = scalar_lea.vmem %s1, %s784
        %s786 = smul.u32 16, %s26
        %s787 = ssub.s32 20, %s786
        %p788 = scmp.lt.s32.totalorder %s787, 16
        %s789 = scalar_select %p788, %s787, 16
        %s790 = smul.u32 128, %s789
        %s791 = smul.u32 16, %s26
        %s792 = ssub.s32 20, %s791
        %p793 = scmp.lt.s32.totalorder %s792, 16
        %s794 = scalar_select %p793, %s792, 16
        %s795 = smul.u32 128, %s794
        %p796 = scmp.lt.s32.totalorder %s25, 1
        %s797 = scalar_select %p796, %s25, 1
        %s798 = smul.addr %s797, 2
        %s799 = smul.addr %s798, 2
        %s800 = scalar_lea.vmem %s4, %s799
        %p802 = scmp.eq.s32.totalorder %s26, 0
        // Predicated region
        $region157: #{swiftkv_attention.1} parent=147 // pred_check
          %p803 = pneg %p802
        $region158: #{swiftkv_attention.1} parent=147 // pred_check_branch
          %805 = sbr.rel (%p803) target = $region160
        $region159: #{swiftkv_attention.1} parent=147 // pred_region
          %vm806 = vcmask 1024
          %807 = vst.msk [vmem:[#allocation2] sm:$0x3] %vm806, -inf
          %808 = vst.msk [vmem:[#allocation2 + $0x2] sm:$0x3] %vm806, -inf
          %809 = vst.msk [vmem:[#allocation3] sm:$0x3] %vm806, 0.0
          %810 = vst.msk [vmem:[#allocation3 + $0x2] sm:$0x3] %vm806, 0.0
          %811 = vst [vmem:[#allocation4] sm:$0x3] 0.0
          %812 = vst [vmem:[#allocation4 + $0x2] sm:$0x3] 0.0
        $region160: #{swiftkv_attention.1} parent=147 // pred_fallthru
          _
        %v813 = vld [vmem:[%s785] sm:$0x1]
        %v814 = vld [vmem:[%s785 + $0x1] sm:$0x1]
        %v815 = vld [vmem:[%s746] sm:$0xf]
        %v816 = vld [vmem:[%s746 + $0x4] sm:$0xf]
        %v817 = vld [vmem:[%s746 + $0x8] sm:$0xf]
        %v818 = vld [vmem:[%s746 + $0xc] sm:$0xf]
        %v819 = vld [vmem:[%s746 + $0x10] sm:$0xf]
        %v820 = vld [vmem:[%s746 + $0x14] sm:$0xf]
        %v821 = vld [vmem:[%s746 + $0x18] sm:$0xf]
        %v822 = vld [vmem:[%s746 + $0x1c] sm:$0xf]
        %v823 = vld [vmem:[%s746 + $0x20] sm:$0xf]
        %v824 = vld [vmem:[%s746 + $0x24] sm:$0xf]
        %v825 = vld [vmem:[%s746 + $0x28] sm:$0xf]
        %v826 = vld [vmem:[%s746 + $0x2c] sm:$0xf]
        %v827 = vld [vmem:[%s746 + $0x30] sm:$0xf]
        %v828 = vld [vmem:[%s746 + $0x34] sm:$0xf]
        %v829 = vld [vmem:[%s746 + $0x38] sm:$0xf]
        %v830 = vld [vmem:[%s746 + $0x3c] sm:$0xf]
        %v831 = vld [vmem:[%s746 + $0x40] sm:$0xf]
        %v832 = vld [vmem:[%s746 + $0x44] sm:$0xf]
        %v833 = vld [vmem:[%s746 + $0x48] sm:$0xf]
        %v834 = vld [vmem:[%s746 + $0x4c] sm:$0xf]
        %v835 = vld [vmem:[%s746 + $0x50] sm:$0xf]
        %v836 = vld [vmem:[%s746 + $0x54] sm:$0xf]
        %v837 = vld [vmem:[%s746 + $0x58] sm:$0xf]
        %v838 = vld [vmem:[%s746 + $0x5c] sm:$0xf]
        %v839 = vld [vmem:[%s746 + $0x60] sm:$0xf]
        %v840 = vld [vmem:[%s746 + $0x64] sm:$0xf]
        %v841 = vld [vmem:[%s746 + $0x68] sm:$0xf]
        %v842 = vld [vmem:[%s746 + $0x6c] sm:$0xf]
        %v843 = vld [vmem:[%s746 + $0x70] sm:$0xf]
        %v844 = vld [vmem:[%s746 + $0x74] sm:$0xf]
        %v845 = vld [vmem:[%s746 + $0x78] sm:$0xf]
        %v846 = vld [vmem:[%s746 + $0x7c] sm:$0xf]
        %v847 = vld [vmem:[%s753] sm:$0xf]
        %v848 = vld [vmem:[%s753 + $0x4] sm:$0xf]
        %v849 = vld [vmem:[%s753 + $0x8] sm:$0xf]
        %v850 = vld [vmem:[%s753 + $0xc] sm:$0xf]
        %v851 = vld [vmem:[%s753 + $0x10] sm:$0xf]
        %v852 = vld [vmem:[%s753 + $0x14] sm:$0xf]
        %v853 = vld [vmem:[%s753 + $0x18] sm:$0xf]
        %v854 = vld [vmem:[%s753 + $0x1c] sm:$0xf]
        %v855 = vld [vmem:[%s753 + $0x20] sm:$0xf]
        %v856 = vld [vmem:[%s753 + $0x24] sm:$0xf]
        %v857 = vld [vmem:[%s753 + $0x28] sm:$0xf]
        %v858 = vld [vmem:[%s753 + $0x2c] sm:$0xf]
        %v859 = vld [vmem:[%s753 + $0x30] sm:$0xf]
        %v860 = vld [vmem:[%s753 + $0x34] sm:$0xf]
        %v861 = vld [vmem:[%s753 + $0x38] sm:$0xf]
        %v862 = vld [vmem:[%s753 + $0x3c] sm:$0xf]
        %v863 = vld [vmem:[%s753 + $0x40] sm:$0xf]
        %v864 = vld [vmem:[%s753 + $0x44] sm:$0xf]
        %v865 = vld [vmem:[%s753 + $0x48] sm:$0xf]
        %v866 = vld [vmem:[%s753 + $0x4c] sm:$0xf]
        %v867 = vld [vmem:[%s753 + $0x50] sm:$0xf]
        %v868 = vld [vmem:[%s753 + $0x54] sm:$0xf]
        %v869 = vld [vmem:[%s753 + $0x58] sm:$0xf]
        %v870 = vld [vmem:[%s753 + $0x5c] sm:$0xf]
        %v871 = vld [vmem:[%s753 + $0x60] sm:$0xf]
        %v872 = vld [vmem:[%s753 + $0x64] sm:$0xf]
        %v873 = vld [vmem:[%s753 + $0x68] sm:$0xf]
        %v874 = vld [vmem:[%s753 + $0x6c] sm:$0xf]
        %v875 = vld [vmem:[%s753 + $0x70] sm:$0xf]
        %v876 = vld [vmem:[%s753 + $0x74] sm:$0xf]
        %v877 = vld [vmem:[%s753 + $0x78] sm:$0xf]
        %v878 = vld [vmem:[%s753 + $0x7c] sm:$0xf]
        %s879 = smul.u32 %s26, 128
        %v880 = vlaneseq
        %v881 = vshrl.u32 %v880, 7
        %v882 = vadd.s32 %v881, 8
        %v883 = vadd.s32 %v881, 16
        %v884 = vadd.s32 %v881, 24
        %v885 = vadd.s32 %v881, 32
        %v886 = vadd.s32 %v881, 40
        %v887 = vadd.s32 %v881, 48
        %v888 = vadd.s32 %v881, 56
        %v889 = vadd.s32 %v881, 64
        %v890 = vadd.s32 %v881, 72
        %v891 = vadd.s32 %v881, 80
        %v892 = vadd.s32 %v881, 88
        %v893 = vadd.s32 %v881, 96
        %v894 = vadd.s32 %v881, 104
        %v895 = vadd.s32 %v881, 112
        %v896 = vadd.s32 %v881, 120
        %v897 = vstv %s879
        %v898 = vadd.s32 %v897, %v881
        %v899 = vadd.s32 %v897, %v882
        %v900 = vadd.s32 %v897, %v883
        %v901 = vadd.s32 %v897, %v884
        %v902 = vadd.s32 %v897, %v885
        %v903 = vadd.s32 %v897, %v886
        %v904 = vadd.s32 %v897, %v887
        %v905 = vadd.s32 %v897, %v888
        %v906 = vadd.s32 %v897, %v889
        %v907 = vadd.s32 %v897, %v890
        %v908 = vadd.s32 %v897, %v891
        %v909 = vadd.s32 %v897, %v892
        %v910 = vadd.s32 %v897, %v893
        %v911 = vadd.s32 %v897, %v894
        %v912 = vadd.s32 %v897, %v895
        %v913 = vadd.s32 %v897, %v896
        %vm914 = vcmp.lt.s32.totalorder %v898, 160
        %vm915 = vcmp.lt.s32.totalorder %v899, 160
        %vm916 = vcmp.lt.s32.totalorder %v900, 160
        %vm917 = vcmp.lt.s32.totalorder %v901, 160
        %vm918 = vcmp.lt.s32.totalorder %v902, 160
        %vm919 = vcmp.lt.s32.totalorder %v903, 160
        %vm920 = vcmp.lt.s32.totalorder %v904, 160
        %vm921 = vcmp.lt.s32.totalorder %v905, 160
        %vm922 = vcmp.lt.s32.totalorder %v906, 160
        %vm923 = vcmp.lt.s32.totalorder %v907, 160
        %vm924 = vcmp.lt.s32.totalorder %v908, 160
        %vm925 = vcmp.lt.s32.totalorder %v909, 160
        %vm926 = vcmp.lt.s32.totalorder %v910, 160
        %vm927 = vcmp.lt.s32.totalorder %v911, 160
        %vm928 = vcmp.lt.s32.totalorder %v912, 160
        %vm929 = vcmp.lt.s32.totalorder %v913, 160
        %v930 = vsel %vm914, 1, 0
        %v931 = vsel %vm915, 1, 0
        %v932 = vsel %vm916, 1, 0
        %v933 = vsel %vm917, 1, 0
        %v934 = vsel %vm918, 1, 0
        %v935 = vsel %vm919, 1, 0
        %v936 = vsel %vm920, 1, 0
        %v937 = vsel %vm921, 1, 0
        %v938 = vsel %vm922, 1, 0
        %v939 = vsel %vm923, 1, 0
        %v940 = vsel %vm924, 1, 0
        %v941 = vsel %vm925, 1, 0
        %v942 = vsel %vm926, 1, 0
        %v943 = vsel %vm927, 1, 0
        %v944 = vsel %vm928, 1, 0
        %v945 = vsel %vm929, 1, 0
        %vm946 = vcmp.eq.s32.totalorder %v930, 1
        %vm947 = vcmp.eq.s32.totalorder %v931, 1
        %vm948 = vcmp.eq.s32.totalorder %v932, 1
        %vm949 = vcmp.eq.s32.totalorder %v933, 1
        %vm950 = vcmp.eq.s32.totalorder %v934, 1
        %vm951 = vcmp.eq.s32.totalorder %v935, 1
        %vm952 = vcmp.eq.s32.totalorder %v936, 1
        %vm953 = vcmp.eq.s32.totalorder %v937, 1
        %vm954 = vcmp.eq.s32.totalorder %v938, 1
        %vm955 = vcmp.eq.s32.totalorder %v939, 1
        %vm956 = vcmp.eq.s32.totalorder %v940, 1
        %vm957 = vcmp.eq.s32.totalorder %v941, 1
        %vm958 = vcmp.eq.s32.totalorder %v942, 1
        %vm959 = vcmp.eq.s32.totalorder %v943, 1
        %vm960 = vcmp.eq.s32.totalorder %v944, 1
        %vm961 = vcmp.eq.s32.totalorder %v945, 1
        %vm962 = vmpackc.low %vm946, %vm946
        %vm963 = vmpackc.low %vm947, %vm947
        %vm964 = vmpackc.low %vm948, %vm948
        %vm965 = vmpackc.low %vm949, %vm949
        %vm966 = vmpackc.low %vm950, %vm950
        %vm967 = vmpackc.low %vm951, %vm951
        %vm968 = vmpackc.low %vm952, %vm952
        %vm969 = vmpackc.low %vm953, %vm953
        %vm970 = vmpackc.low %vm954, %vm954
        %vm971 = vmpackc.low %vm955, %vm955
        %vm972 = vmpackc.low %vm956, %vm956
        %vm973 = vmpackc.low %vm957, %vm957
        %vm974 = vmpackc.low %vm958, %vm958
        %vm975 = vmpackc.low %vm959, %vm959
        %vm976 = vmpackc.low %vm960, %vm960
        %vm977 = vmpackc.low %vm961, %vm961
        %v978 = vsel %vm962, %v847, 0
        %v979 = vsel %vm963, %v848, 0
        %v980 = vsel %vm964, %v849, 0
        %v981 = vsel %vm965, %v850, 0
        %v982 = vsel %vm966, %v851, 0
        %v983 = vsel %vm967, %v852, 0
        %v984 = vsel %vm968, %v853, 0
        %v985 = vsel %vm969, %v854, 0
        %v986 = vsel %vm970, %v855, 0
        %v987 = vsel %vm971, %v856, 0
        %v988 = vsel %vm972, %v857, 0
        %v989 = vsel %vm973, %v858, 0
        %v990 = vsel %vm974, %v859, 0
        %v991 = vsel %vm975, %v860, 0
        %v992 = vsel %vm976, %v861, 0
        %v993 = vsel %vm977, %v862, 0
        %v994 = vsel %vm962, %v863, 0
        %v995 = vsel %vm963, %v864, 0
        %v996 = vsel %vm964, %v865, 0
        %v997 = vsel %vm965, %v866, 0
        %v998 = vsel %vm966, %v867, 0
        %v999 = vsel %vm967, %v868, 0
        %v1000 = vsel %vm968, %v869, 0
        %v1001 = vsel %vm969, %v870, 0
        %v1002 = vsel %vm970, %v871, 0
        %v1003 = vsel %vm971, %v872, 0
        %v1004 = vsel %vm972, %v873, 0
        %v1005 = vsel %vm973, %v874, 0
        %v1006 = vsel %vm974, %v875, 0
        %v1007 = vsel %vm975, %v876, 0
        %v1008 = vsel %vm976, %v877, 0
        %v1009 = vsel %vm977, %v878, 0
        %v1026 = vunpack.c.l.b16 %v815
        %v1027 = vunpack.c.l.b16 %v816
        %v1028 = vunpack.c.l.b16 %v817
        %v1029 = vunpack.c.l.b16 %v818
        %v1030 = vunpack.c.l.b16 %v819
        %v1031 = vunpack.c.l.b16 %v820
        %v1032 = vunpack.c.l.b16 %v821
        %v1033 = vunpack.c.l.b16 %v822
        %v1034 = vunpack.c.l.b16 %v823
        %v1035 = vunpack.c.l.b16 %v824
        %v1036 = vunpack.c.l.b16 %v825
        %v1037 = vunpack.c.l.b16 %v826
        %v1038 = vunpack.c.l.b16 %v827
        %v1039 = vunpack.c.l.b16 %v828
        %v1040 = vunpack.c.l.b16 %v829
        %v1041 = vunpack.c.l.b16 %v830
        %v1042 = vpack.c.b16 %v1027, %v1026
        %v1043 = vpack.c.b16 %v1029, %v1028
        %v1044 = vpack.c.b16 %v1031, %v1030
        %v1045 = vpack.c.b16 %v1033, %v1032
        %v1046 = vpack.c.b16 %v1035, %v1034
        %v1047 = vpack.c.b16 %v1037, %v1036
        %v1048 = vpack.c.b16 %v1039, %v1038
        %v1049 = vpack.c.b16 %v1041, %v1040
        %1058 = vmatprep.subr.bf16.mxu0 0
        %1059 = vmatpush1.bf16.xpose.msra.mxu0 %v1049
        %1060 = vmatprep.subr.bf16.mxu0 0
        %1061 = vmatpush1.bf16.xpose.msra.mxu0 %v1048
        %1062 = vmatprep.subr.bf16.mxu0 0
        %1063 = vmatpush1.bf16.xpose.msra.mxu0 %v1047
        %1064 = vmatprep.subr.bf16.mxu0 0
        %1065 = vmatpush1.bf16.xpose.msra.mxu0 %v1046
        %1066 = vmatprep.subr.bf16.mxu0 0
        %1067 = vmatpush1.bf16.xpose.msra.mxu0 %v1045
        %1068 = vmatprep.subr.bf16.mxu0 0
        %1069 = vmatpush1.bf16.xpose.msra.mxu0 %v1044
        %1070 = vmatprep.subr.bf16.mxu0 0
        %1071 = vmatpush1.bf16.xpose.msra.mxu0 %v1043
        %1072 = vmatprep.subr.bf16.mxu0 0
        %1073 = vmatpush1.bf16.xpose.msra.mxu0 %v1042
        %1074 = vmatprep.subr.bf16.mxu0 0
        %1075 = vmatpush2.bf16.xpose.msra.mxu0 0
        %1076 = vmatprep.subr.bf16.mxu0 0
        %1077 = vmatpush2.bf16.xpose.msra.mxu0 0
        %1078 = vmatprep.subr.bf16.mxu0 0
        %1079 = vmatpush2.bf16.xpose.msra.mxu0 0
        %1080 = vmatprep.subr.bf16.mxu0 0
        %1081 = vmatpush2.bf16.xpose.msra.mxu0 0
        %1082 = vmatprep.subr.bf16.mxu0 0
        %1083 = vmatpush2.bf16.xpose.msra.mxu0 0
        %1084 = vmatprep.subr.bf16.mxu0 0
        %1085 = vmatpush2.bf16.xpose.msra.mxu0 0
        %1086 = vmatprep.subr.bf16.mxu0 0
        %1087 = vmatpush2.bf16.xpose.msra.mxu0 0
        %1088 = vmatprep.subr.bf16.mxu0 0
        %1089 = vmatpush2.bf16.xpose.msra.mxu0 0
        %1090 = vmatprep.mubr.bf16.mxu0 0
        %1091 = vmatmul.mubr.bf16.gmra.mxu0 %v813
        %v1092 = vpop.f32.mrf.mxu0
        %v1093 = vadd.f32 0.0, %v1092
        %v1094 = vpop.f32.mrf.mxu0
        %v1095 = vpop.f32.mrf.mxu0
        %v1096 = vpop.f32.mrf.mxu0
        %1097 = vdwg.mxu0
        %v1114 = vunpack.c.l.b16 %v831
        %v1115 = vunpack.c.l.b16 %v832
        %v1116 = vunpack.c.l.b16 %v833
        %v1117 = vunpack.c.l.b16 %v834
        %v1118 = vunpack.c.l.b16 %v835
        %v1119 = vunpack.c.l.b16 %v836
        %v1120 = vunpack.c.l.b16 %v837
        %v1121 = vunpack.c.l.b16 %v838
        %v1122 = vunpack.c.l.b16 %v839
        %v1123 = vunpack.c.l.b16 %v840
        %v1124 = vunpack.c.l.b16 %v841
        %v1125 = vunpack.c.l.b16 %v842
        %v1126 = vunpack.c.l.b16 %v843
        %v1127 = vunpack.c.l.b16 %v844
        %v1128 = vunpack.c.l.b16 %v845
        %v1129 = vunpack.c.l.b16 %v846
        %v1130 = vpack.c.b16 %v1115, %v1114
        %v1131 = vpack.c.b16 %v1117, %v1116
        %v1132 = vpack.c.b16 %v1119, %v1118
        %v1133 = vpack.c.b16 %v1121, %v1120
        %v1134 = vpack.c.b16 %v1123, %v1122
        %v1135 = vpack.c.b16 %v1125, %v1124
        %v1136 = vpack.c.b16 %v1127, %v1126
        %v1137 = vpack.c.b16 %v1129, %v1128
        %1146 = vmatprep.subr.bf16.mxu0 0
        %1147 = vmatpush1.bf16.xpose.msra.mxu0 %v1137
        %1148 = vmatprep.subr.bf16.mxu0 0
        %1149 = vmatpush1.bf16.xpose.msra.mxu0 %v1136
        %1150 = vmatprep.subr.bf16.mxu0 0
        %1151 = vmatpush1.bf16.xpose.msra.mxu0 %v1135
        %1152 = vmatprep.subr.bf16.mxu0 0
        %1153 = vmatpush1.bf16.xpose.msra.mxu0 %v1134
        %1154 = vmatprep.subr.bf16.mxu0 0
        %1155 = vmatpush1.bf16.xpose.msra.mxu0 %v1133
        %1156 = vmatprep.subr.bf16.mxu0 0
        %1157 = vmatpush1.bf16.xpose.msra.mxu0 %v1132
        %1158 = vmatprep.subr.bf16.mxu0 0
        %1159 = vmatpush1.bf16.xpose.msra.mxu0 %v1131
        %1160 = vmatprep.subr.bf16.mxu0 0
        %1161 = vmatpush1.bf16.xpose.msra.mxu0 %v1130
        %1162 = vmatprep.subr.bf16.mxu0 0
        %1163 = vmatpush2.bf16.xpose.msra.mxu0 0
        %1164 = vmatprep.subr.bf16.mxu0 0
        %1165 = vmatpush2.bf16.xpose.msra.mxu0 0
        %1166 = vmatprep.subr.bf16.mxu0 0
        %1167 = vmatpush2.bf16.xpose.msra.mxu0 0
        %1168 = vmatprep.subr.bf16.mxu0 0
        %1169 = vmatpush2.bf16.xpose.msra.mxu0 0
        %1170 = vmatprep.subr.bf16.mxu0 0
        %1171 = vmatpush2.bf16.xpose.msra.mxu0 0
        %1172 = vmatprep.subr.bf16.mxu0 0
        %1173 = vmatpush2.bf16.xpose.msra.mxu0 0
        %1174 = vmatprep.subr.bf16.mxu0 0
        %1175 = vmatpush2.bf16.xpose.msra.mxu0 0
        %1176 = vmatprep.subr.bf16.mxu0 0
        %1177 = vmatpush2.bf16.xpose.msra.mxu0 0
        %1178 = vmatprep.mubr.bf16.mxu0 0
        %1179 = vmatmul.mubr.bf16.gmra.mxu0 %v814
        %v1180 = vpop.f32.mrf.mxu0
        %v1181 = vadd.f32 0.0, %v1180
        %v1182 = vpop.f32.mrf.mxu0
        %v1183 = vpop.f32.mrf.mxu0
        %v1184 = vpop.f32.mrf.mxu0
        %1185 = vdwg.mxu0
        %v1186 = vlaneseq
        %v1187 = vand.u32 %v1186, 127
        %v1188 = vadd.s32 %v897, %v1187
        %s1189 = sld [smem:[#allocation6 + %s25]]
        %v1190 = vstv %s1189
        %vm1191 = vcmp.lt.s32.totalorder %v1188, %v1190
        %v1192 = vsel %vm1191, 1, 0
        %vm1193 = vcmp.eq.s32.totalorder %v1192, 1
        %v1194 = vsel %vm1193, %v1093, -10000.0
        %v1195 = vsel %vm1193, %v1181, -10000.0
        %v1196 = vld [vmem:[#allocation2] sm:$0x3]
        %v1197 = vld [vmem:[#allocation2 + $0x2] sm:$0x3]
        %vm1198 = vcmask 1041408
        %v1199 = vsel %vm1198, %v1194, -inf
        %1200 = vmax.xlane.f32.xlu0 %v1199
        %v1201 = vpop.xlane.xlu0 %1200
        %v1202 = vsel %vm1198, %v1195, -inf
        %1203 = vmax.xlane.f32.xlu0 %v1202
        %v1204 = vpop.xlane.xlu0 %1203
        %v1205 = vmax.f32 %v1196, %v1201
        %v1206 = vmax.f32 %v1197, %v1204
        %v1207 = vsub.f32 %v1196, %v1205
        %v1208 = vsub.f32 %v1197, %v1206
        %v1209 = vmul.f32 %v1207, 1.442695
        %v1210 = vpow.pop %v1209
        %v1211 = vmul.f32 %v1208, 1.442695
        %v1212 = vpow.pop %v1211
        %1214 = vset.pattern.permute.xlu0 0
        %1215 = vperm.xlu0 %1214, %v1205
        %v1216 = vpop.permute.xlu0 %1215
        %1219 = vset.pattern.permute.xlu0 0
        %1220 = vperm.xlu0 %1219, %v1206
        %v1221 = vpop.permute.xlu0 %1220
        %v1223 = vsub.f32 %v1194, %v1216
        %v1224 = vsub.f32 %v1195, %v1221
        %v1225 = vmul.f32 %v1223, 1.442695
        %v1226 = vpow.pop %v1225
        %v1227 = vmul.f32 %v1224, 1.442695
        %v1228 = vpow.pop %v1227
        %v1229 = vld [vmem:[#allocation3] sm:$0x3]
        %v1230 = vld [vmem:[#allocation3 + $0x2] sm:$0x3]
        %v1231 = vmul.f32 %v1210, %v1229
        %v1232 = vmul.f32 %v1212, %v1230
        %v1233 = vsel %vm1198, %v1226, 0.0
        %1234 = vadd.xlane.f32.xlu0 %v1233
        %v1235 = vpop.xlane.xlu0 %1234
        %v1236 = vsel %vm1198, %v1228, 0.0
        %1237 = vadd.xlane.f32.xlu0 %v1236
        %v1238 = vpop.xlane.xlu0 %1237
        %v1239 = vadd.f32 %v1231, %v1235
        %v1240 = vadd.f32 %v1232, %v1238
        %vm1241 = vcmask 1024
        %1242 = vst.msk [vmem:[#allocation3] sm:$0x3] %vm1241, %v1239
        %1243 = vst.msk [vmem:[#allocation3 + $0x2] sm:$0x3] %vm1241, %v1240
        %v1244 = vpack.c.bf16 %v1226, %v1226
        %v1245 = vpack.c.bf16 %v1228, %v1228
        %v1262 = vunpack.c.l.b16 %v978
        %v1263 = vunpack.c.l.b16 %v979
        %v1264 = vunpack.c.l.b16 %v980
        %v1265 = vunpack.c.l.b16 %v981
        %v1266 = vunpack.c.l.b16 %v982
        %v1267 = vunpack.c.l.b16 %v983
        %v1268 = vunpack.c.l.b16 %v984
        %v1269 = vunpack.c.l.b16 %v985
        %v1270 = vunpack.c.l.b16 %v986
        %v1271 = vunpack.c.l.b16 %v987
        %v1272 = vunpack.c.l.b16 %v988
        %v1273 = vunpack.c.l.b16 %v989
        %v1274 = vunpack.c.l.b16 %v990
        %v1275 = vunpack.c.l.b16 %v991
        %v1276 = vunpack.c.l.b16 %v992
        %v1277 = vunpack.c.l.b16 %v993
        %v1278 = vpack.c.b16 %v1263, %v1262
        %v1279 = vpack.c.b16 %v1265, %v1264
        %v1280 = vpack.c.b16 %v1267, %v1266
        %v1281 = vpack.c.b16 %v1269, %v1268
        %v1282 = vpack.c.b16 %v1271, %v1270
        %v1283 = vpack.c.b16 %v1273, %v1272
        %v1284 = vpack.c.b16 %v1275, %v1274
        %v1285 = vpack.c.b16 %v1277, %v1276
        %1294 = vmatprep.subr.bf16.mxu0 0
        %1295 = vmatpush1.bf16.msra.mxu0 %v1285
        %1296 = vmatprep.subr.bf16.mxu0 0
        %1297 = vmatpush1.bf16.msra.mxu0 %v1284
        %1298 = vmatprep.subr.bf16.mxu0 0
        %1299 = vmatpush1.bf16.msra.mxu0 %v1283
        %1300 = vmatprep.subr.bf16.mxu0 0
        %1301 = vmatpush1.bf16.msra.mxu0 %v1282
        %1302 = vmatprep.subr.bf16.mxu0 0
        %1303 = vmatpush1.bf16.msra.mxu0 %v1281
        %1304 = vmatprep.subr.bf16.mxu0 0
        %1305 = vmatpush1.bf16.msra.mxu0 %v1280
        %1306 = vmatprep.subr.bf16.mxu0 0
        %1307 = vmatpush1.bf16.msra.mxu0 %v1279
        %1308 = vmatprep.subr.bf16.mxu0 0
        %1309 = vmatpush1.bf16.msra.mxu0 %v1278
        %1310 = vmatprep.subr.bf16.mxu0 0
        %1311 = vmatpush2.bf16.msra.mxu0 0
        %1312 = vmatprep.subr.bf16.mxu0 0
        %1313 = vmatpush2.bf16.msra.mxu0 0
        %1314 = vmatprep.subr.bf16.mxu0 0
        %1315 = vmatpush2.bf16.msra.mxu0 0
        %1316 = vmatprep.subr.bf16.mxu0 0
        %1317 = vmatpush2.bf16.msra.mxu0 0
        %1318 = vmatprep.subr.bf16.mxu0 0
        %1319 = vmatpush2.bf16.msra.mxu0 0
        %1320 = vmatprep.subr.bf16.mxu0 0
        %1321 = vmatpush2.bf16.msra.mxu0 0
        %1322 = vmatprep.subr.bf16.mxu0 0
        %1323 = vmatpush2.bf16.msra.mxu0 0
        %1324 = vmatprep.subr.bf16.mxu0 0
        %1325 = vmatpush2.bf16.msra.mxu0 0
        %1326 = vmatprep.mubr.bf16.mxu0 0
        %1327 = vmatmul.mubr.bf16.gmra.mxu0 %v1244
        %v1328 = vpop.f32.mrf.mxu0
        %v1329 = vadd.f32 0.0, %v1328
        %v1330 = vpop.f32.mrf.mxu0
        %v1331 = vpop.f32.mrf.mxu0
        %v1332 = vpop.f32.mrf.mxu0
        %1333 = vdwg.mxu0
        %v1350 = vunpack.c.l.b16 %v994
        %v1351 = vunpack.c.l.b16 %v995
        %v1352 = vunpack.c.l.b16 %v996
        %v1353 = vunpack.c.l.b16 %v997
        %v1354 = vunpack.c.l.b16 %v998
        %v1355 = vunpack.c.l.b16 %v999
        %v1356 = vunpack.c.l.b16 %v1000
        %v1357 = vunpack.c.l.b16 %v1001
        %v1358 = vunpack.c.l.b16 %v1002
        %v1359 = vunpack.c.l.b16 %v1003
        %v1360 = vunpack.c.l.b16 %v1004
        %v1361 = vunpack.c.l.b16 %v1005
        %v1362 = vunpack.c.l.b16 %v1006
        %v1363 = vunpack.c.l.b16 %v1007
        %v1364 = vunpack.c.l.b16 %v1008
        %v1365 = vunpack.c.l.b16 %v1009
        %v1366 = vpack.c.b16 %v1351, %v1350
        %v1367 = vpack.c.b16 %v1353, %v1352
        %v1368 = vpack.c.b16 %v1355, %v1354
        %v1369 = vpack.c.b16 %v1357, %v1356
        %v1370 = vpack.c.b16 %v1359, %v1358
        %v1371 = vpack.c.b16 %v1361, %v1360
        %v1372 = vpack.c.b16 %v1363, %v1362
        %v1373 = vpack.c.b16 %v1365, %v1364
        %1382 = vmatprep.subr.bf16.mxu0 0
        %1383 = vmatpush1.bf16.msra.mxu0 %v1373
        %1384 = vmatprep.subr.bf16.mxu0 0
        %1385 = vmatpush1.bf16.msra.mxu0 %v1372
        %1386 = vmatprep.subr.bf16.mxu0 0
        %1387 = vmatpush1.bf16.msra.mxu0 %v1371
        %1388 = vmatprep.subr.bf16.mxu0 0
        %1389 = vmatpush1.bf16.msra.mxu0 %v1370
        %1390 = vmatprep.subr.bf16.mxu0 0
        %1391 = vmatpush1.bf16.msra.mxu0 %v1369
        %1392 = vmatprep.subr.bf16.mxu0 0
        %1393 = vmatpush1.bf16.msra.mxu0 %v1368
        %1394 = vmatprep.subr.bf16.mxu0 0
        %1395 = vmatpush1.bf16.msra.mxu0 %v1367
        %1396 = vmatprep.subr.bf16.mxu0 0
        %1397 = vmatpush1.bf16.msra.mxu0 %v1366
        %1398 = vmatprep.subr.bf16.mxu0 0
        %1399 = vmatpush2.bf16.msra.mxu0 0
        %1400 = vmatprep.subr.bf16.mxu0 0
        %1401 = vmatpush2.bf16.msra.mxu0 0
        %1402 = vmatprep.subr.bf16.mxu0 0
        %1403 = vmatpush2.bf16.msra.mxu0 0
        %1404 = vmatprep.subr.bf16.mxu0 0
        %1405 = vmatpush2.bf16.msra.mxu0 0
        %1406 = vmatprep.subr.bf16.mxu0 0
        %1407 = vmatpush2.bf16.msra.mxu0 0
        %1408 = vmatprep.subr.bf16.mxu0 0
        %1409 = vmatpush2.bf16.msra.mxu0 0
        %1410 = vmatprep.subr.bf16.mxu0 0
        %1411 = vmatpush2.bf16.msra.mxu0 0
        %1412 = vmatprep.subr.bf16.mxu0 0
        %1413 = vmatpush2.bf16.msra.mxu0 0
        %1414 = vmatprep.mubr.bf16.mxu0 0
        %1415 = vmatmul.mubr.bf16.gmra.mxu0 %v1245
        %v1416 = vpop.f32.mrf.mxu0
        %v1417 = vadd.f32 0.0, %v1416
        %v1418 = vpop.f32.mrf.mxu0
        %v1419 = vpop.f32.mrf.mxu0
        %v1420 = vpop.f32.mrf.mxu0
        %1421 = vdwg.mxu0
        %v1422 = vld [vmem:[#allocation4] sm:$0x3]
        %v1423 = vld [vmem:[#allocation4 + $0x2] sm:$0x3]
        %1425 = vset.pattern.permute.xlu0 0
        %1426 = vperm.xlu0 %1425, %v1210
        %v1427 = vpop.permute.xlu0 %1426
        %1430 = vset.pattern.permute.xlu0 0
        %1431 = vperm.xlu0 %1430, %v1212
        %v1432 = vpop.permute.xlu0 %1431
        %v1434 = vmul.f32 %v1427, %v1422
        %v1435 = vmul.f32 %v1432, %v1423
        %v1436 = vadd.f32 %v1434, %v1329
        %v1437 = vadd.f32 %v1435, %v1417
        %1438 = vst [vmem:[#allocation4] sm:$0x3] %v1436
        %1439 = vst [vmem:[#allocation4 + $0x2] sm:$0x3] %v1437
        %1440 = vst.msk [vmem:[#allocation2] sm:$0x3] %vm1241, %v1205
        %1441 = vst.msk [vmem:[#allocation2 + $0x2] sm:$0x3] %vm1241, %v1206
        %p1442 = scmp.eq.s32.totalorder %s26, 1
        // Predicated region
        $region161: #{swiftkv_attention.1} parent=147 // pred_check
          %p1443 = pneg %p1442
        $region162: #{swiftkv_attention.1} parent=147 // pred_check_branch
          %1445 = sbr.rel (%p1443) target = $region164
        $region163: #{swiftkv_attention.1} parent=147 // pred_region
          %v1446 = vld [vmem:[#allocation3] sm:$0x3]
          %v1447 = vld [vmem:[#allocation3 + $0x2] sm:$0x3]
          %v1448 = vrcp.pop %v1446
          %v1449 = vrcp.pop %v1447
          %v1450 = vld [vmem:[#allocation4] sm:$0x3]
          %v1451 = vld [vmem:[#allocation4 + $0x2] sm:$0x3]
          %1453 = vset.pattern.permute.xlu0 0
          %1454 = vperm.xlu0 %1453, %v1448
          %v1455 = vpop.permute.xlu0 %1454
          %1458 = vset.pattern.permute.xlu0 0
          %1459 = vperm.xlu0 %1458, %v1449
          %v1460 = vpop.permute.xlu0 %1459
          %v1462 = vmul.f32 %v1450, %v1455
          %v1463 = vmul.f32 %v1451, %v1460
          %1464 = vst [vmem:[%s800] sm:$0x3] %v1462
          %1465 = vst [vmem:[%s800 + $0x2] sm:$0x3] %v1463
        $region164: #{swiftkv_attention.1} parent=147 // pred_fallthru
          _
        %p1466 = scmp.lt.s32.totalorder %s25, 1
        %s1467 = scalar_select %p1466, %s25, 1
        %s1468 = smul.addr %s1467, 2
        %s1469 = smul.addr %s1468, 2
        %s1470 = scalar_lea.vmem %s4, %s1469
        // Predicated region
        $region165: #{swiftkv_attention.1} parent=147 // pred_check
          %p1471 = pneg %p133
        $region166: #{swiftkv_attention.1} parent=147 // pred_check_branch
          %1473 = sbr.rel (%p1471) target = $region168
        $region167: #{swiftkv_attention.1} parent=147 // pred_region
          _
        $region168: #{swiftkv_attention.1} parent=147 // pred_fallthru
          _
      $region148: #{swiftkv_attention.1} parent=5 // pred_fallthru
        _
      %p1474 = scmp.le.s32.totalorder 2, %s16
      // Predicated region
      $region169: #{swiftkv_attention.1} parent=5 // pred_check
        %p1475 = pneg %p1474
      $region170: #{swiftkv_attention.1} parent=5 // pred_check_branch
        %1477 = sbr.rel (%p1475) target = $region172
      $region171: #{swiftkv_attention.1} parent=5 // pred_region
        %s1478 = ssub.s32 %s16, 2
        // Predicated region
        $region173: #{swiftkv_attention.1} parent=171 // pred_check
          %p1479 = pneg %p139
        $region174: #{swiftkv_attention.1} parent=171 // pred_check_branch
          %1481 = sbr.rel (%p1479) target = $region176
        $region175: #{swiftkv_attention.1} parent=171 // pred_region
          %p1482 = scmp.lt.s32.totalorder %s27, 1
          %s1483 = scalar_select %p1482, %s27, 1
          %s1484 = smul.addr %s1483, 2
          %s1485 = smul.addr %s1484, 2
          %s1486 = scalar_lea.vmem %s4, %s1485
        $region176: #{swiftkv_attention.1} parent=171 // pred_fallthru
          _
      $region172: #{swiftkv_attention.1} parent=5 // pred_fallthru
        _
    $region6: #{swiftkv_attention.1} parent=1 // loop_footer
      %s20 = sadd.s32 1, %s16
    $region7: #{swiftkv_attention.1} parent=1 // loop_footer_branch
      %15 = sbr.rel target = $region3
    $region8: #{swiftkv_attention.1} parent=1 // loop_exit
      _

</llo_original>
